<compile_context>
chip_gen: v7x
topology: tpu7x:2x2x1
jax: 0.10.0
libtpu: 0.0.40
codegen_flags: <defaults>
</compile_context>

<pallas_src>
import functools

import numpy as np
import jax
import jax.numpy as jnp
from jax import lax
from jax.experimental import pallas as pl
from jax.experimental.pallas import tpu as pltpu


def _make_divisible(v, divisor, min_value=None):
    if min_value is None:
        min_value = divisor
    new_v = max(min_value, int(v + divisor / 2) // divisor * divisor)
    if new_v < 0.9 * v:
        new_v += divisor
    return new_v


def _pick_b_tile(B, F, HW, *, max_tile=8, vmem_budget=8 << 20, min_steps=4):
    """Largest divisor of B that keeps ~4 live f32 (F, HW) temps per image under
    a conservative VMEM budget, capped so large batches still get several grid
    steps (pipelining + 2-TC split on v7x)."""
    per_img = 4 * F * HW * 4
    cap = max(1, min(max_tile, vmem_budget // max(per_img, 1)))
    if B > min_steps:
        cap = min(cap, max(1, B // min_steps))
    bt = 1
    for d in range(1, min(B, cap) + 1):
        if B % d == 0:
            bt = d
    return bt


# ---------------------------------------------------------------------------
# Pallas kernel: B_TILE images per grid step, (C, H*W) lane-dense layout.
# ---------------------------------------------------------------------------
def _inv_bottleneck_kernel(
    x_ref,       # (B_TILE, Cin, HW)   input images
    w1_ref,      # (F, Cin)            expansion weights (unscaled)
    s1_ref,      # (F, 1)              BN1 scale (f32)
    b1_ref,      # (F, 1)              BN1 bias  (f32)
    wdw_ref,     # (F, ker*ker)        depthwise weights, BN2 scale folded (f32)
    b2_ref,      # (F, 1)              BN2 bias  (f32)
    w3_ref,      # (Cout, F)           projection weights (unscaled, matmul dtype)
    s3_ref,      # (Cout, 1)           BN3 scale (f32)
    b3_ref,      # (Cout, 1)           BN3 bias  (f32)
    mask_ref,    # (ker*ker-1, HW)     0/1 validity masks (non-center taps)
    out_ref,     # (B_TILE, Cout, HW)
    *,
    H, W, Cin, F, ker, b_tile, use_residual, use_vpu_expand, matmul_dtype,
):
    HW = H * W
    p = ker // 2
    center = p * ker + p

    w1 = w1_ref[...]
    s1 = s1_ref[...]
    b1 = b1_ref[...]
    wdw = wdw_ref[...]
    b2 = b2_ref[...]
    w3 = w3_ref[...]
    s3 = s3_ref[...]
    b3 = b3_ref[...]
    masks = mask_ref[...]                                  # (ker*ker-1, HW)

    if use_vpu_expand:
        w1s = w1 * s1                                      # exact f32 fold, tiny (F, Cin)

    for b in range(b_tile):                                # static unrolled batch-tile loop
        xb = x_ref[b]                                      # (Cin, HW)

        # ---- 1x1 expansion conv (+ BN1) + ReLU6 ----
        if use_vpu_expand:
            # Degenerate contraction (Cin <= 8): VPU broadcast-MACs, no bf16 cast, no MXU.
            xf = xb.astype(jnp.float32)
            t1 = w1s[:, 0:1] * xf[0:1, :]
            for c in range(1, Cin):
                t1 = t1 + w1s[:, c:c + 1] * xf[c:c + 1, :]
        else:
            # MXU path: (F, Cin) @ (Cin, HW), f32 accumulation, BN scale applied in f32.
            t1 = jnp.dot(w1, xb, preferred_element_type=jnp.float32) * s1
        t1 = jnp.clip(t1 + b1, 0.0, 6.0)                   # (F, HW) f32

        # ---- depthwise ker x ker conv, stride 1, zero padding (+ BN2) + ReLU6 ----
        # Spatial taps = lane rolls (XLU, co-issues with VPU) * 0/1 boundary mask.
        acc = t1 * wdw[:, center:center + 1]               # center tap (mask is all-ones)
        mrow = 0
        for ky in range(ker):                              # static unrolled 3x3 loop
            for kx in range(ker):
                dy, dx = ky - p, kx - p
                if dy == 0 and dx == 0:
                    continue
                s = dy * W + dx                            # flattened spatial offset
                idx = ky * ker + kx
                # shifted[i] = t1[i + s]; wrap-around is killed by the mask.
                shifted = pltpu.roll(t1, shift=(-s) % HW, axis=1)
                acc = acc + shifted * wdw[:, idx:idx + 1] * masks[mrow:mrow + 1, :]
                mrow += 1
        t2 = jnp.clip(acc + b2, 0.0, 6.0)                  # (F, HW) f32

        # ---- 1x1 projection conv (+ BN3) : MXU (Cout, F) @ (F, HW) ----
        ob = jnp.dot(w3, t2.astype(matmul_dtype),
                     preferred_element_type=jnp.float32)
        ob = ob * s3 + b3                                  # BN3 applied to f32 accumulator

        if use_residual:
            ob = ob + xb.astype(jnp.float32)

        out_ref[b, :, :] = ob.astype(out_ref.dtype)


# ---------------------------------------------------------------------------
# Wrapper
# ---------------------------------------------------------------------------
def inv_bottleneck_forward(x_nchw, kparams, *, ker=3, stride=1,
                           matmul_dtype=jnp.bfloat16, b_tile=None):
    assert stride == 1, "TODO(synk): stride > 1 depthwise conv not implemented"
    assert ker % 2 == 1, "roll+mask depthwise assumes odd kernel size"
    B, Cin, H, W = x_nchw.shape
    F = kparams["w1"].shape[0]
    Cout = kparams["w3"].shape[0]
    HW = H * W
    p = ker // 2
    use_residual = (stride == 1) and (Cin == Cout)
    use_vpu_expand = Cin <= 8

    if b_tile is None:
        b_tile = _pick_b_tile(B, F, HW)
    # TODO(synk): pad the batch instead of asserting when B % b_tile != 0.
    assert B % b_tile == 0, (B, b_tile)
    G = B // b_tile

    # Free reshape (no transpose, no HBM round trip): NCHW -> (B, C, H*W).
    x = x_nchw.reshape(B, Cin, HW)
    if (not use_vpu_expand) and matmul_dtype != x.dtype:
        # Pre-cast once in the wrapper (halves x DMA per step, removes in-kernel cast).
        # Note: the residual add then uses the rounded x.
        x = x.astype(matmul_dtype)

    # Boundary masks for the non-center taps only, sublane-exact (ker*ker-1, HW):
    # mask[j, h*W+w] = 1 iff (h+dy, w+dx) lies inside the image (implicit zero pad).
    rows_i = np.arange(H)[:, None]
    cols_i = np.arange(W)[None, :]
    m = []
    for ky in range(ker):
        for kx in range(ker):
            dy, dx = ky - p, kx - p
            if dy == 0 and dx == 0:
                continue
            valid = ((rows_i + dy >= 0) & (rows_i + dy < H) &
                     (cols_i + dx >= 0) & (cols_i + dx < W))
            m.append(valid.reshape(1, HW))
    dwmask = jnp.asarray(np.concatenate(m, axis=0).astype(np.float32))

    # Expansion weights stay f32 on the VPU path; projection weights go to the
    # matmul dtype UNSCALED (BN scale applied to the f32 accumulator in-kernel).
    w1 = kparams["w1"].astype(jnp.float32 if use_vpu_expand else matmul_dtype)
    w3 = kparams["w3"].astype(matmul_dtype)

    kernel = functools.partial(
        _inv_bottleneck_kernel,
        H=H, W=W, Cin=Cin, F=F, ker=ker, b_tile=b_tile,
        use_residual=use_residual, use_vpu_expand=use_vpu_expand,
        matmul_dtype=matmul_dtype,
    )

    const2 = lambda g: (0, 0)

    grid_spec = pltpu.PrefetchScalarGridSpec(
        num_scalar_prefetch=0,
        grid=(G,),
        in_specs=[
            pl.BlockSpec((b_tile, Cin, HW), lambda g: (g, 0, 0)),
            pl.BlockSpec((F, Cin), const2),
            pl.BlockSpec((F, 1), const2),
            pl.BlockSpec((F, 1), const2),
            pl.BlockSpec((F, ker * ker), const2),
            pl.BlockSpec((F, 1), const2),
            pl.BlockSpec((Cout, F), const2),
            pl.BlockSpec((Cout, 1), const2),
            pl.BlockSpec((Cout, 1), const2),
            pl.BlockSpec((ker * ker - 1, HW), const2),
        ],
        out_specs=pl.BlockSpec((b_tile, Cout, HW), lambda g: (g, 0, 0)),
    )

    out = pl.pallas_call(
        kernel,
        out_shape=jax.ShapeDtypeStruct((B, Cout, HW), x_nchw.dtype),
        grid_spec=grid_spec,
        compiler_params=pltpu.CompilerParams(
            # Batch-tile steps are independent -> megacore sharding on v7x.
            dimension_semantics=("parallel",),
            # Tiny working set here; raise per-generation once the spatial tiling
            # TODO is implemented (v5e/v6e up to ~96 MiB, v7x keep <= ~48 MiB).
            vmem_limit_bytes=32 * 1024 * 1024,
        ),
    )(x, w1, kparams["s1"], kparams["b1"], kparams["wdw"], kparams["b2"],
      w3, kparams["s3"], kparams["b3"], dwmask)

    return out.reshape(B, Cout, H, W)                      # free reshape back to NCHW


# ---------------------------------------------------------------------------
# Deterministic parameter construction (matches nn.Module shapes).
# Returns kernel params + raw reference params.
# ---------------------------------------------------------------------------
def make_params(key, inplanes, planes, ker=3, exp=6, eps=1e-5):
    F = _make_divisible(round(inplanes * exp), 8)
    ks = jax.random.split(key, 15)

    # Conv weights in PyTorch layout.
    w1_pt = 0.1 * jax.random.normal(ks[0], (F, inplanes, 1, 1), jnp.float32)
    wdw_pt = 0.1 * jax.random.normal(ks[1], (F, 1, ker, ker), jnp.float32)
    w3_pt = 0.1 * jax.random.normal(ks[2], (planes, F, 1, 1), jnp.float32)

    def bn(kg, kb, km, kv, C):
        gamma = 1.0 + 0.1 * jax.random.normal(kg, (C,), jnp.float32)
        beta = 0.1 * jax.random.normal(kb, (C,), jnp.float32)
        mean = 0.1 * jax.random.normal(km, (C,), jnp.float32)
        var = 0.5 + jax.random.uniform(kv, (C,), jnp.float32)
        s = gamma / jnp.sqrt(var + eps)
        b = beta - mean * s
        return s, b

    s1, b1 = bn(ks[3], ks[4], ks[5], ks[6], F)
    s2, b2 = bn(ks[7], ks[8], ks[9], ks[10], F)
    s3, b3 = bn(ks[11], ks[12], ks[13], ks[14], planes)

    w1_2d = w1_pt[:, :, 0, 0]                      # (F, Cin)
    wdw_2d = wdw_pt[:, 0].reshape(F, ker * ker)    # (F, ker*ker), idx = ky*ker+kx
    w3_2d = w3_pt[:, :, 0, 0]                      # (Cout, F)

    kernel_params = {
        # 1x1 conv weights UNSCALED (BN scale applied to the f32 accumulator in-kernel,
        # so a bf16 weight cast never sees the fold); depthwise fold stays f32 -> exact.
        "w1": w1_2d,                               # (F, Cin)
        "s1": s1[:, None], "b1": b1[:, None],      # (F, 1)
        "wdw": s2[:, None] * wdw_2d,               # (F, ker*ker), s2 folded (f32)
        "b2": b2[:, None],                         # (F, 1)
        "w3": w3_2d,                               # (Cout, F)
        "s3": s3[:, None], "b3": b3[:, None],      # (Cout, 1)
    }
    ref_params = {                                 # raw weights + BN affine for reference
        "w1": jnp.transpose(w1_2d, (1, 0)).reshape(1, 1, inplanes, F),
        "wdw": jnp.transpose(wdw_pt[:, 0], (1, 2, 0)).reshape(ker, ker, 1, F),
        "w3": jnp.transpose(w3_2d, (1, 0)).reshape(1, 1, F, planes),
        "s1": s1, "b1": b1, "s2": s2, "b2": b2, "s3": s3, "b3": b3,
    }
    return kernel_params, ref_params, F


# ---------------------------------------------------------------------------
# Pure-JAX reference (lax.conv, BN applied un-folded) for verification.
# ---------------------------------------------------------------------------
def reference_forward(x_nchw, rparams, *, ker=3, stride=1):
    B, Cin, H, W = x_nchw.shape
    F = rparams["w1"].shape[-1]
    Cout = rparams["w3"].shape[-1]
    use_residual = (stride == 1) and (Cin == Cout)
    p = ker // 2
    dn = ("NHWC", "HWIO", "NHWC")

    x = jnp.transpose(x_nchw, (0, 2, 3, 1))
    y = lax.conv_general_dilated(x, rparams["w1"], (1, 1), "VALID",
                                 dimension_numbers=dn)
    y = jnp.clip(y * rparams["s1"] + rparams["b1"], 0.0, 6.0)
    y = lax.conv_general_dilated(y, rparams["wdw"], (stride, stride),
                                 [(p, p), (p, p)], dimension_numbers=dn,
                                 feature_group_count=F)
    y = jnp.clip(y * rparams["s2"] + rparams["b2"], 0.0, 6.0)
    y = lax.conv_general_dilated(y, rparams["w3"], (1, 1), "VALID",
                                 dimension_numbers=dn)
    y = y * rparams["s3"] + rparams["b3"]
    if use_residual:
        y = y + x
    return jnp.transpose(y, (0, 3, 1, 2))


if __name__ == "__main__":
    B, Cin, H, W = 2, 4, 16, 16
    planes, stride, ker, exp = 4, 1, 3, 6

    key = jax.random.PRNGKey(0)
    k_x, k_p = jax.random.split(key)
    x = jax.random.normal(k_x, (B, Cin, H, W), jnp.float32)
    kparams, rparams, F = make_params(k_p, Cin, planes, ker=ker, exp=exp)

    ref = jax.block_until_ready(reference_forward(x, rparams, ker=ker, stride=stride))

    # f32-matmul path: tight numerical check against the lax.conv reference.
    out_f32 = jax.block_until_ready(
        inv_bottleneck_forward(x, kparams, ker=ker, stride=stride,
                               matmul_dtype=jnp.float32))
    assert out_f32.shape == (B, planes, H, W), out_f32.shape
    assert jnp.allclose(out_f32, ref, atol=1e-4, rtol=1e-4), \
        float(jnp.max(jnp.abs(out_f32 - ref)))

    # bf16-matmul path (default): only the projection matmul is bf16 now.
    out_bf16 = jax.block_until_ready(
        inv_bottleneck_forward(x, kparams, ker=ker, stride=stride,
                               matmul_dtype=jnp.bfloat16))
    assert jnp.allclose(out_bf16, ref, atol=5e-2, rtol=5e-2), \
        float(jnp.max(jnp.abs(out_bf16 - ref)))

    print("KERNEL_OK")
</pallas_src>

<mosaic_0001>
module attributes {stable_mosaic.version = 11 : i64} {
  func.func @_inv_bottleneck_kernel(%arg0: i32, %arg1: memref<2x4x256xf32, #tpu.memory_space<vmem>>, %arg2: memref<24x4xf32, #tpu.memory_space<vmem>>, %arg3: memref<24x1xf32, #tpu.memory_space<vmem>>, %arg4: memref<24x1xf32, #tpu.memory_space<vmem>>, %arg5: memref<24x9xf32, #tpu.memory_space<vmem>>, %arg6: memref<24x1xf32, #tpu.memory_space<vmem>>, %arg7: memref<4x24xf32, #tpu.memory_space<vmem>>, %arg8: memref<4x1xf32, #tpu.memory_space<vmem>>, %arg9: memref<4x1xf32, #tpu.memory_space<vmem>>, %arg10: memref<8x256xf32, #tpu.memory_space<vmem>>, %arg11: memref<2x4x256xf32, #tpu.memory_space<vmem>>) attributes {dimension_semantics = [#tpu.dimension_semantics<parallel>], iteration_bounds = array<i64: 1>, scalar_prefetch = 0 : i64, scratch_operands = 0 : i64, tpu.core_type = #tpu.core_type<tc>, window_params = [{transform_indices = @transform_0, window_bounds = array<i64: 2, 4, 256>}, {pipeline_mode = #tpu.pipeline_mode<synchronous>, transform_indices = @transform_1, window_bounds = array<i64: 24, 4>}, {pipeline_mode = #tpu.pipeline_mode<synchronous>, transform_indices = @transform_2, window_bounds = array<i64: 24, 1>}, {pipeline_mode = #tpu.pipeline_mode<synchronous>, transform_indices = @transform_3, window_bounds = array<i64: 24, 1>}, {pipeline_mode = #tpu.pipeline_mode<synchronous>, transform_indices = @transform_4, window_bounds = array<i64: 24, 9>}, {pipeline_mode = #tpu.pipeline_mode<synchronous>, transform_indices = @transform_5, window_bounds = array<i64: 24, 1>}, {pipeline_mode = #tpu.pipeline_mode<synchronous>, transform_indices = @transform_6, window_bounds = array<i64: 4, 24>}, {pipeline_mode = #tpu.pipeline_mode<synchronous>, transform_indices = @transform_7, window_bounds = array<i64: 4, 1>}, {pipeline_mode = #tpu.pipeline_mode<synchronous>, transform_indices = @transform_8, window_bounds = array<i64: 4, 1>}, {pipeline_mode = #tpu.pipeline_mode<synchronous>, transform_indices = @transform_9, window_bounds = array<i64: 8, 256>}, {transform_indices = @transform_10, window_bounds = array<i64: 2, 4, 256>}]} {
    %c0 = arith.constant 0 : index
    %c0_0 = arith.constant 0 : index
    %0 = vector.load %arg2[%c0, %c0_0] : memref<24x4xf32, #tpu.memory_space<vmem>>, vector<24x4xf32>
    %c0_1 = arith.constant 0 : index
    %c0_2 = arith.constant 0 : index
    %1 = vector.load %arg3[%c0_1, %c0_2] : memref<24x1xf32, #tpu.memory_space<vmem>>, vector<24x1xf32>
    %c0_3 = arith.constant 0 : index
    %c0_4 = arith.constant 0 : index
    %2 = vector.load %arg4[%c0_3, %c0_4] : memref<24x1xf32, #tpu.memory_space<vmem>>, vector<24x1xf32>
    %c0_5 = arith.constant 0 : index
    %c0_6 = arith.constant 0 : index
    %3 = vector.load %arg5[%c0_5, %c0_6] : memref<24x9xf32, #tpu.memory_space<vmem>>, vector<24x9xf32>
    %c0_7 = arith.constant 0 : index
    %c0_8 = arith.constant 0 : index
    %4 = vector.load %arg6[%c0_7, %c0_8] : memref<24x1xf32, #tpu.memory_space<vmem>>, vector<24x1xf32>
    %c0_9 = arith.constant 0 : index
    %c0_10 = arith.constant 0 : index
    %5 = vector.load %arg7[%c0_9, %c0_10] : memref<4x24xf32, #tpu.memory_space<vmem>>, vector<4x24xf32>
    %c0_11 = arith.constant 0 : index
    %c0_12 = arith.constant 0 : index
    %6 = vector.load %arg8[%c0_11, %c0_12] : memref<4x1xf32, #tpu.memory_space<vmem>>, vector<4x1xf32>
    %c0_13 = arith.constant 0 : index
    %c0_14 = arith.constant 0 : index
    %7 = vector.load %arg9[%c0_13, %c0_14] : memref<4x1xf32, #tpu.memory_space<vmem>>, vector<4x1xf32>
    %c0_15 = arith.constant 0 : index
    %c0_16 = arith.constant 0 : index
    %8 = vector.load %arg10[%c0_15, %c0_16] : memref<8x256xf32, #tpu.memory_space<vmem>>, vector<8x256xf32>
    %9 = vector.broadcast %1 : vector<24x1xf32> to vector<24x4xf32>
    %10 = arith.mulf %0, %9 : vector<24x4xf32>
    %c0_17 = arith.constant 0 : index
    %c0_18 = arith.constant 0 : index
    %c0_19 = arith.constant 0 : index
    %11 = vector.load %arg1[%c0_17, %c0_18, %c0_19] : memref<2x4x256xf32, #tpu.memory_space<vmem>>, vector<1x4x256xf32>
    %12 = vector.shape_cast %11 : vector<1x4x256xf32> to vector<4x256xf32>
    %13 = vector.extract_strided_slice %10 {offsets = [0, 0], sizes = [24, 1], strides = [1, 1]} : vector<24x4xf32> to vector<24x1xf32>
    %14 = vector.extract_strided_slice %12 {offsets = [0, 0], sizes = [1, 256], strides = [1, 1]} : vector<4x256xf32> to vector<1x256xf32>
    %15 = vector.broadcast %13 : vector<24x1xf32> to vector<24x256xf32>
    %16 = vector.broadcast %14 : vector<1x256xf32> to vector<24x256xf32>
    %17 = arith.mulf %15, %16 : vector<24x256xf32>
    %18 = vector.extract_strided_slice %10 {offsets = [0, 1], sizes = [24, 1], strides = [1, 1]} : vector<24x4xf32> to vector<24x1xf32>
    %19 = vector.extract_strided_slice %12 {offsets = [1, 0], sizes = [1, 256], strides = [1, 1]} : vector<4x256xf32> to vector<1x256xf32>
    %20 = vector.broadcast %18 : vector<24x1xf32> to vector<24x256xf32>
    %21 = vector.broadcast %19 : vector<1x256xf32> to vector<24x256xf32>
    %22 = arith.mulf %20, %21 : vector<24x256xf32>
    %23 = arith.addf %17, %22 : vector<24x256xf32>
    %24 = vector.extract_strided_slice %10 {offsets = [0, 2], sizes = [24, 1], strides = [1, 1]} : vector<24x4xf32> to vector<24x1xf32>
    %25 = vector.extract_strided_slice %12 {offsets = [2, 0], sizes = [1, 256], strides = [1, 1]} : vector<4x256xf32> to vector<1x256xf32>
    %26 = vector.broadcast %24 : vector<24x1xf32> to vector<24x256xf32>
    %27 = vector.broadcast %25 : vector<1x256xf32> to vector<24x256xf32>
    %28 = arith.mulf %26, %27 : vector<24x256xf32>
    %29 = arith.addf %23, %28 : vector<24x256xf32>
    %30 = vector.extract_strided_slice %10 {offsets = [0, 3], sizes = [24, 1], strides = [1, 1]} : vector<24x4xf32> to vector<24x1xf32>
    %31 = vector.extract_strided_slice %12 {offsets = [3, 0], sizes = [1, 256], strides = [1, 1]} : vector<4x256xf32> to vector<1x256xf32>
    %32 = vector.broadcast %30 : vector<24x1xf32> to vector<24x256xf32>
    %33 = vector.broadcast %31 : vector<1x256xf32> to vector<24x256xf32>
    %34 = arith.mulf %32, %33 : vector<24x256xf32>
    %35 = arith.addf %29, %34 : vector<24x256xf32>
    %36 = vector.broadcast %2 : vector<24x1xf32> to vector<24x256xf32>
    %37 = arith.addf %35, %36 : vector<24x256xf32>
    %cst = arith.constant 0.000000e+00 : f32
    %cst_20 = arith.constant 6.000000e+00 : f32
    %38 = vector.broadcast %cst : f32 to vector<24x256xf32>
    %39 = arith.maximumf %38, %37 : vector<24x256xf32>
    %40 = vector.broadcast %cst_20 : f32 to vector<24x256xf32>
    %41 = arith.minimumf %40, %39 : vector<24x256xf32>
    %42 = vector.extract_strided_slice %3 {offsets = [0, 4], sizes = [24, 1], strides = [1, 1]} : vector<24x9xf32> to vector<24x1xf32>
    %43 = vector.broadcast %42 : vector<24x1xf32> to vector<24x256xf32>
    %44 = arith.mulf %41, %43 : vector<24x256xf32>
    %c17_i32 = arith.constant 17 : i32
    %45 = tpu.dynamic_rotate %41 by %c17_i32 dim 1 : vector<24x256xf32>, i32 -> vector<24x256xf32>
    %46 = vector.extract_strided_slice %3 {offsets = [0, 0], sizes = [24, 1], strides = [1, 1]} : vector<24x9xf32> to vector<24x1xf32>
    %47 = vector.broadcast %46 : vector<24x1xf32> to vector<24x256xf32>
    %48 = arith.mulf %45, %47 : vector<24x256xf32>
    %49 = vector.extract_strided_slice %8 {offsets = [0, 0], sizes = [1, 256], strides = [1, 1]} : vector<8x256xf32> to vector<1x256xf32>
    %50 = vector.broadcast %49 : vector<1x256xf32> to vector<24x256xf32>
    %51 = arith.mulf %48, %50 : vector<24x256xf32>
    %52 = arith.addf %44, %51 : vector<24x256xf32>
    %c16_i32 = arith.constant 16 : i32
    %53 = tpu.dynamic_rotate %41 by %c16_i32 dim 1 : vector<24x256xf32>, i32 -> vector<24x256xf32>
    %54 = vector.extract_strided_slice %3 {offsets = [0, 1], sizes = [24, 1], strides = [1, 1]} : vector<24x9xf32> to vector<24x1xf32>
    %55 = vector.broadcast %54 : vector<24x1xf32> to vector<24x256xf32>
    %56 = arith.mulf %53, %55 : vector<24x256xf32>
    %57 = vector.extract_strided_slice %8 {offsets = [1, 0], sizes = [1, 256], strides = [1, 1]} : vector<8x256xf32> to vector<1x256xf32>
    %58 = vector.broadcast %57 : vector<1x256xf32> to vector<24x256xf32>
    %59 = arith.mulf %56, %58 : vector<24x256xf32>
    %60 = arith.addf %52, %59 : vector<24x256xf32>
    %c15_i32 = arith.constant 15 : i32
    %61 = tpu.dynamic_rotate %41 by %c15_i32 dim 1 : vector<24x256xf32>, i32 -> vector<24x256xf32>
    %62 = vector.extract_strided_slice %3 {offsets = [0, 2], sizes = [24, 1], strides = [1, 1]} : vector<24x9xf32> to vector<24x1xf32>
    %63 = vector.broadcast %62 : vector<24x1xf32> to vector<24x256xf32>
    %64 = arith.mulf %61, %63 : vector<24x256xf32>
    %65 = vector.extract_strided_slice %8 {offsets = [2, 0], sizes = [1, 256], strides = [1, 1]} : vector<8x256xf32> to vector<1x256xf32>
    %66 = vector.broadcast %65 : vector<1x256xf32> to vector<24x256xf32>
    %67 = arith.mulf %64, %66 : vector<24x256xf32>
    %68 = arith.addf %60, %67 : vector<24x256xf32>
    %c1_i32 = arith.constant 1 : i32
    %69 = tpu.dynamic_rotate %41 by %c1_i32 dim 1 : vector<24x256xf32>, i32 -> vector<24x256xf32>
    %70 = vector.extract_strided_slice %3 {offsets = [0, 3], sizes = [24, 1], strides = [1, 1]} : vector<24x9xf32> to vector<24x1xf32>
    %71 = vector.broadcast %70 : vector<24x1xf32> to vector<24x256xf32>
    %72 = arith.mulf %69, %71 : vector<24x256xf32>
    %73 = vector.extract_strided_slice %8 {offsets = [3, 0], sizes = [1, 256], strides = [1, 1]} : vector<8x256xf32> to vector<1x256xf32>
    %74 = vector.broadcast %73 : vector<1x256xf32> to vector<24x256xf32>
    %75 = arith.mulf %72, %74 : vector<24x256xf32>
    %76 = arith.addf %68, %75 : vector<24x256xf32>
    %c255_i32 = arith.constant 255 : i32
    %77 = tpu.dynamic_rotate %41 by %c255_i32 dim 1 : vector<24x256xf32>, i32 -> vector<24x256xf32>
    %78 = vector.extract_strided_slice %3 {offsets = [0, 5], sizes = [24, 1], strides = [1, 1]} : vector<24x9xf32> to vector<24x1xf32>
    %79 = vector.broadcast %78 : vector<24x1xf32> to vector<24x256xf32>
    %80 = arith.mulf %77, %79 : vector<24x256xf32>
    %81 = vector.extract_strided_slice %8 {offsets = [4, 0], sizes = [1, 256], strides = [1, 1]} : vector<8x256xf32> to vector<1x256xf32>
    %82 = vector.broadcast %81 : vector<1x256xf32> to vector<24x256xf32>
    %83 = arith.mulf %80, %82 : vector<24x256xf32>
    %84 = arith.addf %76, %83 : vector<24x256xf32>
    %c241_i32 = arith.constant 241 : i32
    %85 = tpu.dynamic_rotate %41 by %c241_i32 dim 1 : vector<24x256xf32>, i32 -> vector<24x256xf32>
    %86 = vector.extract_strided_slice %3 {offsets = [0, 6], sizes = [24, 1], strides = [1, 1]} : vector<24x9xf32> to vector<24x1xf32>
    %87 = vector.broadcast %86 : vector<24x1xf32> to vector<24x256xf32>
    %88 = arith.mulf %85, %87 : vector<24x256xf32>
    %89 = vector.extract_strided_slice %8 {offsets = [5, 0], sizes = [1, 256], strides = [1, 1]} : vector<8x256xf32> to vector<1x256xf32>
    %90 = vector.broadcast %89 : vector<1x256xf32> to vector<24x256xf32>
    %91 = arith.mulf %88, %90 : vector<24x256xf32>
    %92 = arith.addf %84, %91 : vector<24x256xf32>
    %c240_i32 = arith.constant 240 : i32
    %93 = tpu.dynamic_rotate %41 by %c240_i32 dim 1 : vector<24x256xf32>, i32 -> vector<24x256xf32>
    %94 = vector.extract_strided_slice %3 {offsets = [0, 7], sizes = [24, 1], strides = [1, 1]} : vector<24x9xf32> to vector<24x1xf32>
    %95 = vector.broadcast %94 : vector<24x1xf32> to vector<24x256xf32>
    %96 = arith.mulf %93, %95 : vector<24x256xf32>
    %97 = vector.extract_strided_slice %8 {offsets = [6, 0], sizes = [1, 256], strides = [1, 1]} : vector<8x256xf32> to vector<1x256xf32>
    %98 = vector.broadcast %97 : vector<1x256xf32> to vector<24x256xf32>
    %99 = arith.mulf %96, %98 : vector<24x256xf32>
    %100 = arith.addf %92, %99 : vector<24x256xf32>
    %c239_i32 = arith.constant 239 : i32
    %101 = tpu.dynamic_rotate %41 by %c239_i32 dim 1 : vector<24x256xf32>, i32 -> vector<24x256xf32>
    %102 = vector.extract_strided_slice %3 {offsets = [0, 8], sizes = [24, 1], strides = [1, 1]} : vector<24x9xf32> to vector<24x1xf32>
    %103 = vector.broadcast %102 : vector<24x1xf32> to vector<24x256xf32>
    %104 = arith.mulf %101, %103 : vector<24x256xf32>
    %105 = vector.extract_strided_slice %8 {offsets = [7, 0], sizes = [1, 256], strides = [1, 1]} : vector<8x256xf32> to vector<1x256xf32>
    %106 = vector.broadcast %105 : vector<1x256xf32> to vector<24x256xf32>
    %107 = arith.mulf %104, %106 : vector<24x256xf32>
    %108 = arith.addf %100, %107 : vector<24x256xf32>
    %109 = vector.broadcast %4 : vector<24x1xf32> to vector<24x256xf32>
    %110 = arith.addf %108, %109 : vector<24x256xf32>
    %cst_21 = arith.constant 0.000000e+00 : f32
    %cst_22 = arith.constant 6.000000e+00 : f32
    %111 = vector.broadcast %cst_21 : f32 to vector<24x256xf32>
    %112 = arith.maximumf %111, %110 : vector<24x256xf32>
    %113 = vector.broadcast %cst_22 : f32 to vector<24x256xf32>
    %114 = arith.minimumf %113, %112 : vector<24x256xf32>
    %cst_23 = arith.constant dense<0.000000e+00> : vector<4x256xf32>
    %115 = tpu.matmul %5, %114, %cst_23 {dimension_numbers = #tpu.dot_dimension_numbers<[1], [0], [0], [1], [0, 0, 1, 1], [], []>} : vector<4x24xf32>, vector<24x256xf32>, vector<4x256xf32> -> vector<4x256xf32>
    %116 = vector.broadcast %6 : vector<4x1xf32> to vector<4x256xf32>
    %117 = arith.mulf %115, %116 : vector<4x256xf32>
    %118 = vector.broadcast %7 : vector<4x1xf32> to vector<4x256xf32>
    %119 = arith.addf %117, %118 : vector<4x256xf32>
    %120 = arith.addf %119, %12 : vector<4x256xf32>
    %c0_24 = arith.constant 0 : index
    %c0_25 = arith.constant 0 : index
    %c0_26 = arith.constant 0 : index
    %121 = vector.load %arg11[%c0_24, %c0_25, %c0_26] : memref<2x4x256xf32, #tpu.memory_space<vmem>>, vector<1x4x256xf32>
    %122 = vector.shape_cast %121 : vector<1x4x256xf32> to vector<4x256xf32>
    %123 = vector.shape_cast %120 : vector<4x256xf32> to vector<1x4x256xf32>
    tpu.vector_store %arg11[%c0_24, %c0_25, %c0_26], %123 {strides = array<i32>} : memref<2x4x256xf32, #tpu.memory_space<vmem>>, vector<1x4x256xf32>,
    %c1 = arith.constant 1 : index
    %c0_27 = arith.constant 0 : index
    %c0_28 = arith.constant 0 : index
    %124 = vector.load %arg1[%c1, %c0_27, %c0_28] : memref<2x4x256xf32, #tpu.memory_space<vmem>>, vector<1x4x256xf32>
    %125 = vector.shape_cast %124 : vector<1x4x256xf32> to vector<4x256xf32>
    %126 = vector.extract_strided_slice %10 {offsets = [0, 0], sizes = [24, 1], strides = [1, 1]} : vector<24x4xf32> to vector<24x1xf32>
    %127 = vector.extract_strided_slice %125 {offsets = [0, 0], sizes = [1, 256], strides = [1, 1]} : vector<4x256xf32> to vector<1x256xf32>
    %128 = vector.broadcast %126 : vector<24x1xf32> to vector<24x256xf32>
    %129 = vector.broadcast %127 : vector<1x256xf32> to vector<24x256xf32>
    %130 = arith.mulf %128, %129 : vector<24x256xf32>
    %131 = vector.extract_strided_slice %10 {offsets = [0, 1], sizes = [24, 1], strides = [1, 1]} : vector<24x4xf32> to vector<24x1xf32>
    %132 = vector.extract_strided_slice %125 {offsets = [1, 0], sizes = [1, 256], strides = [1, 1]} : vector<4x256xf32> to vector<1x256xf32>
    %133 = vector.broadcast %131 : vector<24x1xf32> to vector<24x256xf32>
    %134 = vector.broadcast %132 : vector<1x256xf32> to vector<24x256xf32>
    %135 = arith.mulf %133, %134 : vector<24x256xf32>
    %136 = arith.addf %130, %135 : vector<24x256xf32>
    %137 = vector.extract_strided_slice %10 {offsets = [0, 2], sizes = [24, 1], strides = [1, 1]} : vector<24x4xf32> to vector<24x1xf32>
    %138 = vector.extract_strided_slice %125 {offsets = [2, 0], sizes = [1, 256], strides = [1, 1]} : vector<4x256xf32> to vector<1x256xf32>
    %139 = vector.broadcast %137 : vector<24x1xf32> to vector<24x256xf32>
    %140 = vector.broadcast %138 : vector<1x256xf32> to vector<24x256xf32>
    %141 = arith.mulf %139, %140 : vector<24x256xf32>
    %142 = arith.addf %136, %141 : vector<24x256xf32>
    %143 = vector.extract_strided_slice %10 {offsets = [0, 3], sizes = [24, 1], strides = [1, 1]} : vector<24x4xf32> to vector<24x1xf32>
    %144 = vector.extract_strided_slice %125 {offsets = [3, 0], sizes = [1, 256], strides = [1, 1]} : vector<4x256xf32> to vector<1x256xf32>
    %145 = vector.broadcast %143 : vector<24x1xf32> to vector<24x256xf32>
    %146 = vector.broadcast %144 : vector<1x256xf32> to vector<24x256xf32>
    %147 = arith.mulf %145, %146 : vector<24x256xf32>
    %148 = arith.addf %142, %147 : vector<24x256xf32>
    %149 = vector.broadcast %2 : vector<24x1xf32> to vector<24x256xf32>
    %150 = arith.addf %148, %149 : vector<24x256xf32>
    %cst_29 = arith.constant 0.000000e+00 : f32
    %cst_30 = arith.constant 6.000000e+00 : f32
    %151 = vector.broadcast %cst_29 : f32 to vector<24x256xf32>
    %152 = arith.maximumf %151, %150 : vector<24x256xf32>
    %153 = vector.broadcast %cst_30 : f32 to vector<24x256xf32>
    %154 = arith.minimumf %153, %152 : vector<24x256xf32>
    %155 = vector.extract_strided_slice %3 {offsets = [0, 4], sizes = [24, 1], strides = [1, 1]} : vector<24x9xf32> to vector<24x1xf32>
    %156 = vector.broadcast %155 : vector<24x1xf32> to vector<24x256xf32>
    %157 = arith.mulf %154, %156 : vector<24x256xf32>
    %c17_i32_31 = arith.constant 17 : i32
    %158 = tpu.dynamic_rotate %154 by %c17_i32_31 dim 1 : vector<24x256xf32>, i32 -> vector<24x256xf32>
    %159 = vector.extract_strided_slice %3 {offsets = [0, 0], sizes = [24, 1], strides = [1, 1]} : vector<24x9xf32> to vector<24x1xf32>
    %160 = vector.broadcast %159 : vector<24x1xf32> to vector<24x256xf32>
    %161 = arith.mulf %158, %160 : vector<24x256xf32>
    %162 = vector.extract_strided_slice %8 {offsets = [0, 0], sizes = [1, 256], strides = [1, 1]} : vector<8x256xf32> to vector<1x256xf32>
    %163 = vector.broadcast %162 : vector<1x256xf32> to vector<24x256xf32>
    %164 = arith.mulf %161, %163 : vector<24x256xf32>
    %165 = arith.addf %157, %164 : vector<24x256xf32>
    %c16_i32_32 = arith.constant 16 : i32
    %166 = tpu.dynamic_rotate %154 by %c16_i32_32 dim 1 : vector<24x256xf32>, i32 -> vector<24x256xf32>
    %167 = vector.extract_strided_slice %3 {offsets = [0, 1], sizes = [24, 1], strides = [1, 1]} : vector<24x9xf32> to vector<24x1xf32>
    %168 = vector.broadcast %167 : vector<24x1xf32> to vector<24x256xf32>
    %169 = arith.mulf %166, %168 : vector<24x256xf32>
    %170 = vector.extract_strided_slice %8 {offsets = [1, 0], sizes = [1, 256], strides = [1, 1]} : vector<8x256xf32> to vector<1x256xf32>
    %171 = vector.broadcast %170 : vector<1x256xf32> to vector<24x256xf32>
    %172 = arith.mulf %169, %171 : vector<24x256xf32>
    %173 = arith.addf %165, %172 : vector<24x256xf32>
    %c15_i32_33 = arith.constant 15 : i32
    %174 = tpu.dynamic_rotate %154 by %c15_i32_33 dim 1 : vector<24x256xf32>, i32 -> vector<24x256xf32>
    %175 = vector.extract_strided_slice %3 {offsets = [0, 2], sizes = [24, 1], strides = [1, 1]} : vector<24x9xf32> to vector<24x1xf32>
    %176 = vector.broadcast %175 : vector<24x1xf32> to vector<24x256xf32>
    %177 = arith.mulf %174, %176 : vector<24x256xf32>
    %178 = vector.extract_strided_slice %8 {offsets = [2, 0], sizes = [1, 256], strides = [1, 1]} : vector<8x256xf32> to vector<1x256xf32>
    %179 = vector.broadcast %178 : vector<1x256xf32> to vector<24x256xf32>
    %180 = arith.mulf %177, %179 : vector<24x256xf32>
    %181 = arith.addf %173, %180 : vector<24x256xf32>
    %c1_i32_34 = arith.constant 1 : i32
    %182 = tpu.dynamic_rotate %154 by %c1_i32_34 dim 1 : vector<24x256xf32>, i32 -> vector<24x256xf32>
    %183 = vector.extract_strided_slice %3 {offsets = [0, 3], sizes = [24, 1], strides = [1, 1]} : vector<24x9xf32> to vector<24x1xf32>
    %184 = vector.broadcast %183 : vector<24x1xf32> to vector<24x256xf32>
    %185 = arith.mulf %182, %184 : vector<24x256xf32>
    %186 = vector.extract_strided_slice %8 {offsets = [3, 0], sizes = [1, 256], strides = [1, 1]} : vector<8x256xf32> to vector<1x256xf32>
    %187 = vector.broadcast %186 : vector<1x256xf32> to vector<24x256xf32>
    %188 = arith.mulf %185, %187 : vector<24x256xf32>
    %189 = arith.addf %181, %188 : vector<24x256xf32>
    %c255_i32_35 = arith.constant 255 : i32
    %190 = tpu.dynamic_rotate %154 by %c255_i32_35 dim 1 : vector<24x256xf32>, i32 -> vector<24x256xf32>
    %191 = vector.extract_strided_slice %3 {offsets = [0, 5], sizes = [24, 1], strides = [1, 1]} : vector<24x9xf32> to vector<24x1xf32>
    %192 = vector.broadcast %191 : vector<24x1xf32> to vector<24x256xf32>
    %193 = arith.mulf %190, %192 : vector<24x256xf32>
    %194 = vector.extract_strided_slice %8 {offsets = [4, 0], sizes = [1, 256], strides = [1, 1]} : vector<8x256xf32> to vector<1x256xf32>
    %195 = vector.broadcast %194 : vector<1x256xf32> to vector<24x256xf32>
    %196 = arith.mulf %193, %195 : vector<24x256xf32>
    %197 = arith.addf %189, %196 : vector<24x256xf32>
    %c241_i32_36 = arith.constant 241 : i32
    %198 = tpu.dynamic_rotate %154 by %c241_i32_36 dim 1 : vector<24x256xf32>, i32 -> vector<24x256xf32>
    %199 = vector.extract_strided_slice %3 {offsets = [0, 6], sizes = [24, 1], strides = [1, 1]} : vector<24x9xf32> to vector<24x1xf32>
    %200 = vector.broadcast %199 : vector<24x1xf32> to vector<24x256xf32>
    %201 = arith.mulf %198, %200 : vector<24x256xf32>
    %202 = vector.extract_strided_slice %8 {offsets = [5, 0], sizes = [1, 256], strides = [1, 1]} : vector<8x256xf32> to vector<1x256xf32>
    %203 = vector.broadcast %202 : vector<1x256xf32> to vector<24x256xf32>
    %204 = arith.mulf %201, %203 : vector<24x256xf32>
    %205 = arith.addf %197, %204 : vector<24x256xf32>
    %c240_i32_37 = arith.constant 240 : i32
    %206 = tpu.dynamic_rotate %154 by %c240_i32_37 dim 1 : vector<24x256xf32>, i32 -> vector<24x256xf32>
    %207 = vector.extract_strided_slice %3 {offsets = [0, 7], sizes = [24, 1], strides = [1, 1]} : vector<24x9xf32> to vector<24x1xf32>
    %208 = vector.broadcast %207 : vector<24x1xf32> to vector<24x256xf32>
    %209 = arith.mulf %206, %208 : vector<24x256xf32>
    %210 = vector.extract_strided_slice %8 {offsets = [6, 0], sizes = [1, 256], strides = [1, 1]} : vector<8x256xf32> to vector<1x256xf32>
    %211 = vector.broadcast %210 : vector<1x256xf32> to vector<24x256xf32>
    %212 = arith.mulf %209, %211 : vector<24x256xf32>
    %213 = arith.addf %205, %212 : vector<24x256xf32>
    %c239_i32_38 = arith.constant 239 : i32
    %214 = tpu.dynamic_rotate %154 by %c239_i32_38 dim 1 : vector<24x256xf32>, i32 -> vector<24x256xf32>
    %215 = vector.extract_strided_slice %3 {offsets = [0, 8], sizes = [24, 1], strides = [1, 1]} : vector<24x9xf32> to vector<24x1xf32>
    %216 = vector.broadcast %215 : vector<24x1xf32> to vector<24x256xf32>
    %217 = arith.mulf %214, %216 : vector<24x256xf32>
    %218 = vector.extract_strided_slice %8 {offsets = [7, 0], sizes = [1, 256], strides = [1, 1]} : vector<8x256xf32> to vector<1x256xf32>
    %219 = vector.broadcast %218 : vector<1x256xf32> to vector<24x256xf32>
    %220 = arith.mulf %217, %219 : vector<24x256xf32>
    %221 = arith.addf %213, %220 : vector<24x256xf32>
    %222 = vector.broadcast %4 : vector<24x1xf32> to vector<24x256xf32>
    %223 = arith.addf %221, %222 : vector<24x256xf32>
    %cst_39 = arith.constant 0.000000e+00 : f32
    %cst_40 = arith.constant 6.000000e+00 : f32
    %224 = vector.broadcast %cst_39 : f32 to vector<24x256xf32>
    %225 = arith.maximumf %224, %223 : vector<24x256xf32>
    %226 = vector.broadcast %cst_40 : f32 to vector<24x256xf32>
    %227 = arith.minimumf %226, %225 : vector<24x256xf32>
    %cst_41 = arith.constant dense<0.000000e+00> : vector<4x256xf32>
    %228 = tpu.matmul %5, %227, %cst_41 {dimension_numbers = #tpu.dot_dimension_numbers<[1], [0], [0], [1], [0, 0, 1, 1], [], []>} : vector<4x24xf32>, vector<24x256xf32>, vector<4x256xf32> -> vector<4x256xf32>
    %229 = vector.broadcast %6 : vector<4x1xf32> to vector<4x256xf32>
    %230 = arith.mulf %228, %229 : vector<4x256xf32>
    %231 = vector.broadcast %7 : vector<4x1xf32> to vector<4x256xf32>
    %232 = arith.addf %230, %231 : vector<4x256xf32>
    %233 = arith.addf %232, %125 : vector<4x256xf32>
    %c1_42 = arith.constant 1 : index
    %c0_43 = arith.constant 0 : index
    %c0_44 = arith.constant 0 : index
    %234 = vector.load %arg11[%c1_42, %c0_43, %c0_44] : memref<2x4x256xf32, #tpu.memory_space<vmem>>, vector<1x4x256xf32>
    %235 = vector.shape_cast %234 : vector<1x4x256xf32> to vector<4x256xf32>
    %236 = vector.shape_cast %233 : vector<4x256xf32> to vector<1x4x256xf32>
    tpu.vector_store %arg11[%c1_42, %c0_43, %c0_44], %236 {strides = array<i32>} : memref<2x4x256xf32, #tpu.memory_space<vmem>>, vector<1x4x256xf32>,
    return
  }
  func.func @transform_0(%arg0: i32) -> (i32, i32, i32) {
    %c0_i32 = arith.constant 0 : i32
    %c0_i32_0 = arith.constant 0 : i32
    %c0_i32_1 = arith.constant 0 : i32
    return %arg0, %c0_i32, %c0_i32_0 : i32, i32, i32
  }
  func.func @transform_1(%arg0: i32) -> (i32, i32) {
    %c0_i32 = arith.constant 0 : i32
    %c0_i32_0 = arith.constant 0 : i32
    %c0_i32_1 = arith.constant 0 : i32
    return %c0_i32, %c0_i32_0 : i32, i32
  }
  func.func @transform_2(%arg0: i32) -> (i32, i32) {
    %c0_i32 = arith.constant 0 : i32
    %c0_i32_0 = arith.constant 0 : i32
    %c0_i32_1 = arith.constant 0 : i32
    return %c0_i32, %c0_i32_0 : i32, i32
  }
  func.func @transform_3(%arg0: i32) -> (i32, i32) {
    %c0_i32 = arith.constant 0 : i32
    %c0_i32_0 = arith.constant 0 : i32
    %c0_i32_1 = arith.constant 0 : i32
    return %c0_i32, %c0_i32_0 : i32, i32
  }
  func.func @transform_4(%arg0: i32) -> (i32, i32) {
    %c0_i32 = arith.constant 0 : i32
    %c0_i32_0 = arith.constant 0 : i32
    %c0_i32_1 = arith.constant 0 : i32
    return %c0_i32, %c0_i32_0 : i32, i32
  }
  func.func @transform_5(%arg0: i32) -> (i32, i32) {
    %c0_i32 = arith.constant 0 : i32
    %c0_i32_0 = arith.constant 0 : i32
    %c0_i32_1 = arith.constant 0 : i32
    return %c0_i32, %c0_i32_0 : i32, i32
  }
  func.func @transform_6(%arg0: i32) -> (i32, i32) {
    %c0_i32 = arith.constant 0 : i32
    %c0_i32_0 = arith.constant 0 : i32
    %c0_i32_1 = arith.constant 0 : i32
    return %c0_i32, %c0_i32_0 : i32, i32
  }
  func.func @transform_7(%arg0: i32) -> (i32, i32) {
    %c0_i32 = arith.constant 0 : i32
    %c0_i32_0 = arith.constant 0 : i32
    %c0_i32_1 = arith.constant 0 : i32
    return %c0_i32, %c0_i32_0 : i32, i32
  }
  func.func @transform_8(%arg0: i32) -> (i32, i32) {
    %c0_i32 = arith.constant 0 : i32
    %c0_i32_0 = arith.constant 0 : i32
    %c0_i32_1 = arith.constant 0 : i32
    return %c0_i32, %c0_i32_0 : i32, i32
  }
  func.func @transform_9(%arg0: i32) -> (i32, i32) {
    %c0_i32 = arith.constant 0 : i32
    %c0_i32_0 = arith.constant 0 : i32
    %c0_i32_1 = arith.constant 0 : i32
    return %c0_i32, %c0_i32_0 : i32, i32
  }
  func.func @transform_10(%arg0: i32) -> (i32, i32, i32) {
    %c0_i32 = arith.constant 0 : i32
    %c0_i32_0 = arith.constant 0 : i32
    %c0_i32_1 = arith.constant 0 : i32
    return %arg0, %c0_i32, %c0_i32_0 : i32, i32, i32
  }
}

</mosaic_0001>

<llo_original>
// kernel: tpu_custom_call.1
$region0: #{tpu_custom_call.1}
  #allocation0 [shape = 'u32[]', space=smem, size = 0x4, offset = 0x4, fixed_abs, tag = 'smem constant byte address 0x4 - core index']
  #allocation1 [shape = 'u32[144,128]{1,0:T(1,128)}', space=vmem, size = 0x12000, scoped, tag = 'internal scratch']
  %s0 = inlined_call_operand.vmem [shape: f32[2,4,256], index: 0, kind: input, shape index: {}]
  %s1 = inlined_call_operand.vmem [shape: f32[24,4], index: 1, kind: input, shape index: {}]
  %s2 = inlined_call_operand.vmem [shape: f32[24,1], index: 2, kind: input, shape index: {}]
  %s3 = inlined_call_operand.vmem [shape: f32[24,1], index: 3, kind: input, shape index: {}]
  %s4 = inlined_call_operand.vmem [shape: f32[24,9], index: 4, kind: input, shape index: {}]
  %s5 = inlined_call_operand.vmem [shape: f32[24,1], index: 5, kind: input, shape index: {}]
  %s6 = inlined_call_operand.vmem [shape: f32[4,24], index: 6, kind: input, shape index: {}]
  %s7 = inlined_call_operand.vmem [shape: f32[4,1], index: 7, kind: input, shape index: {}]
  %s8 = inlined_call_operand.vmem [shape: f32[4,1], index: 8, kind: input, shape index: {}]
  %s9 = inlined_call_operand.vmem [shape: f32[8,256], index: 9, kind: input, shape index: {}]
  %s10 = inlined_call_operand.hbm [shape: f32[2,4,256], index: 10, kind: output, shape index: {}]
  %s11 = sld [smem:[#allocation0]]
  $region50: #{tpu_custom_call.1} parent=0
    _
  %s13 = ssub.s32 1, %s11
  %s14 = scalar_select 0, %s13, %s11
  $region1: #{tpu_custom_call.1} parent=0
    #allocation2 [shape = 'u8[8192]{0}', space=vmem, size = 0x2000, scoped, tag = 'output window, operand 0, single buffered']
    #allocation3 [shape = 's32[1]{0}', space=sflag, size = 0x4, scoped, tag = 'scoped memory for tpu_custom_call.1']
    %15 = vsyncpa [#allocation3], 0
    // Predicated region
    $region2: #{tpu_custom_call.1} parent=1 // pred_check
      _
    $region3: #{tpu_custom_call.1} parent=1 // pred_check_branch
      %17 = sbr.rel (0) target = $region5
    $region4: #{tpu_custom_call.1} parent=1 // pred_region
      _
    $region5: #{tpu_custom_call.1} parent=1 // pred_fallthru
      _
    // Predicated region
    $region6: #{tpu_custom_call.1} parent=1 // pred_check
      _
    $region7: #{tpu_custom_call.1} parent=1 // pred_check_branch
      %19 = sbr.rel (0) target = $region9
    $region8: #{tpu_custom_call.1} parent=1 // pred_region
      _
    $region9: #{tpu_custom_call.1} parent=1 // pred_fallthru
      _
    // Predicated region
    $region10: #{tpu_custom_call.1} parent=1 // pred_check
      _
    $region11: #{tpu_custom_call.1} parent=1 // pred_check_branch
      %21 = sbr.rel (0) target = $region13
    $region12: #{tpu_custom_call.1} parent=1 // pred_region
      _
    $region13: #{tpu_custom_call.1} parent=1 // pred_fallthru
      _
    // Predicated region
    $region14: #{tpu_custom_call.1} parent=1 // pred_check
      _
    $region15: #{tpu_custom_call.1} parent=1 // pred_check_branch
      %23 = sbr.rel (0) target = $region17
    $region16: #{tpu_custom_call.1} parent=1 // pred_region
      _
    $region17: #{tpu_custom_call.1} parent=1 // pred_fallthru
      _
    // Predicated region
    $region18: #{tpu_custom_call.1} parent=1 // pred_check
      _
    $region19: #{tpu_custom_call.1} parent=1 // pred_check_branch
      %25 = sbr.rel (0) target = $region21
    $region20: #{tpu_custom_call.1} parent=1 // pred_region
      _
    $region21: #{tpu_custom_call.1} parent=1 // pred_fallthru
      _
    // Predicated region
    $region22: #{tpu_custom_call.1} parent=1 // pred_check
      _
    $region23: #{tpu_custom_call.1} parent=1 // pred_check_branch
      %27 = sbr.rel (0) target = $region25
    $region24: #{tpu_custom_call.1} parent=1 // pred_region
      _
    $region25: #{tpu_custom_call.1} parent=1 // pred_fallthru
      _
    // Predicated region
    $region26: #{tpu_custom_call.1} parent=1 // pred_check
      _
    $region27: #{tpu_custom_call.1} parent=1 // pred_check_branch
      %29 = sbr.rel (0) target = $region29
    $region28: #{tpu_custom_call.1} parent=1 // pred_region
      _
    $region29: #{tpu_custom_call.1} parent=1 // pred_fallthru
      _
    // Predicated region
    $region30: #{tpu_custom_call.1} parent=1 // pred_check
      _
    $region31: #{tpu_custom_call.1} parent=1 // pred_check_branch
      %31 = sbr.rel (0) target = $region33
    $region32: #{tpu_custom_call.1} parent=1 // pred_region
      _
    $region33: #{tpu_custom_call.1} parent=1 // pred_fallthru
      _
    // Predicated region
    $region34: #{tpu_custom_call.1} parent=1 // pred_check
      _
    $region35: #{tpu_custom_call.1} parent=1 // pred_check_branch
      %33 = sbr.rel (0) target = $region37
    $region36: #{tpu_custom_call.1} parent=1 // pred_region
      _
    $region37: #{tpu_custom_call.1} parent=1 // pred_fallthru
      _
    // Predicated region
    $region38: #{tpu_custom_call.1} parent=1 // pred_check
      _
    $region39: #{tpu_custom_call.1} parent=1 // pred_check_branch
      %35 = sbr.rel (0) target = $region41
    $region40: #{tpu_custom_call.1} parent=1 // pred_region
      _
    $region41: #{tpu_custom_call.1} parent=1 // pred_fallthru
      _
    %v36 = vld [vmem:[%s1] sm:$0xff]
    %v37 = vld [vmem:[%s1 + $0x8] sm:$0xff]
    %v38 = vld [vmem:[%s1 + $0x10] sm:$0xff]
    %v39 = vld [vmem:[%s2] sm:$0xff]
    %v40 = vld [vmem:[%s2 + $0x8] sm:$0xff]
    %v41 = vld [vmem:[%s2 + $0x10] sm:$0xff]
    %v42 = vld [vmem:[%s3] sm:$0xff]
    %v43 = vld [vmem:[%s3 + $0x8] sm:$0xff]
    %v44 = vld [vmem:[%s3 + $0x10] sm:$0xff]
    %v45 = vld [vmem:[%s4] sm:$0xff]
    %v46 = vld [vmem:[%s4 + $0x8] sm:$0xff]
    %v47 = vld [vmem:[%s4 + $0x10] sm:$0xff]
    %v48 = vld [vmem:[%s5] sm:$0xff]
    %v49 = vld [vmem:[%s5 + $0x8] sm:$0xff]
    %v50 = vld [vmem:[%s5 + $0x10] sm:$0xff]
    %v51 = vld [vmem:[%s6] sm:$0xf]
    %v52 = vld [vmem:[%s7] sm:$0xf]
    %v53 = vld [vmem:[%s8] sm:$0xf]
    %v54 = vld [vmem:[%s9] sm:$0xff]
    %v55 = vld [vmem:[%s9 + $0x8] sm:$0xff]
    %57 = vset.pattern.permute.xlu0 0
    %58 = vperm.xlu0 %57, %v39
    %v59 = vpop.permute.xlu0 %58
    %62 = vset.pattern.permute.xlu0 0
    %63 = vperm.xlu0 %62, %v40
    %v64 = vpop.permute.xlu0 %63
    %67 = vset.pattern.permute.xlu0 0
    %68 = vperm.xlu0 %67, %v41
    %v69 = vpop.permute.xlu0 %68
    %v71 = vmul.f32 %v36, %v59
    %v72 = vmul.f32 %v37, %v64
    %v73 = vmul.f32 %v38, %v69
    %v74 = vld [vmem:[%s0] sm:$0xff]
    %76 = vset.pattern.permute.xlu0 0
    %77 = vperm.xlu0 %76, %v71
    %v78 = vpop.permute.xlu0 %77
    %81 = vset.pattern.permute.xlu0 0
    %82 = vperm.xlu0 %81, %v72
    %v83 = vpop.permute.xlu0 %82
    %86 = vset.pattern.permute.xlu0 0
    %87 = vperm.xlu0 %86, %v73
    %v88 = vpop.permute.xlu0 %87
    %v91 = vlaneseq
    %v92 = vshrl.u32 %v91, 7
    %v93 = vsub.s32 0, %v92
    %v94 = vrot.slane %v74, %v93
    %v95 = vlaneseq
    %v96 = vshrl.u32 %v95, 7
    %v97 = vsub.s32 4, %v96
    %v98 = vrot.slane %v74, %v97
    %v101 = vlaneseq
    %v102 = vshrl.u32 %v101, 7
    %v103 = vsub.s32 0, %v102
    %v104 = vrot.slane %v94, %v103
    %v105 = vlaneseq
    %v106 = vshrl.u32 %v105, 7
    %v107 = vsub.s32 0, %v106
    %v108 = vrot.slane %v98, %v107
    %v109 = vmul.f32 %v78, %v104
    %v110 = vmul.f32 %v78, %v108
    %v111 = vmul.f32 %v83, %v104
    %v112 = vmul.f32 %v83, %v108
    %v113 = vmul.f32 %v88, %v104
    %v114 = vmul.f32 %v88, %v108
    %115 = vset.pattern.permute.xlu0 1
    %116 = vperm.xlu0 %115, %v71
    %v117 = vpop.permute.xlu0 %116
    %119 = vset.pattern.permute.xlu0 1
    %120 = vperm.xlu0 %119, %v72
    %v121 = vpop.permute.xlu0 %120
    %123 = vset.pattern.permute.xlu0 1
    %124 = vperm.xlu0 %123, %v73
    %v125 = vpop.permute.xlu0 %124
    %v127 = vlaneseq
    %v128 = vshrl.u32 %v127, 7
    %v129 = vsub.s32 1, %v128
    %v130 = vrot.slane %v74, %v129
    %v131 = vlaneseq
    %v132 = vshrl.u32 %v131, 7
    %v133 = vsub.s32 5, %v132
    %v134 = vrot.slane %v74, %v133
    %v137 = vlaneseq
    %v138 = vshrl.u32 %v137, 7
    %v139 = vsub.s32 1, %v138
    %v140 = vrot.slane %v130, %v139
    %v141 = vlaneseq
    %v142 = vshrl.u32 %v141, 7
    %v143 = vsub.s32 1, %v142
    %v144 = vrot.slane %v134, %v143
    %v145 = vmul.f32 %v117, %v140
    %v146 = vmul.f32 %v117, %v144
    %v147 = vmul.f32 %v121, %v140
    %v148 = vmul.f32 %v121, %v144
    %v149 = vmul.f32 %v125, %v140
    %v150 = vmul.f32 %v125, %v144
    %v151 = vadd.f32 %v109, %v145
    %v152 = vadd.f32 %v110, %v146
    %v153 = vadd.f32 %v111, %v147
    %v154 = vadd.f32 %v112, %v148
    %v155 = vadd.f32 %v113, %v149
    %v156 = vadd.f32 %v114, %v150
    %157 = vset.pattern.permute.xlu0 2
    %158 = vperm.xlu0 %157, %v71
    %v159 = vpop.permute.xlu0 %158
    %161 = vset.pattern.permute.xlu0 2
    %162 = vperm.xlu0 %161, %v72
    %v163 = vpop.permute.xlu0 %162
    %165 = vset.pattern.permute.xlu0 2
    %166 = vperm.xlu0 %165, %v73
    %v167 = vpop.permute.xlu0 %166
    %v169 = vlaneseq
    %v170 = vshrl.u32 %v169, 7
    %v171 = vsub.s32 2, %v170
    %v172 = vrot.slane %v74, %v171
    %v173 = vlaneseq
    %v174 = vshrl.u32 %v173, 7
    %v175 = vsub.s32 6, %v174
    %v176 = vrot.slane %v74, %v175
    %v179 = vlaneseq
    %v180 = vshrl.u32 %v179, 7
    %v181 = vsub.s32 2, %v180
    %v182 = vrot.slane %v172, %v181
    %v183 = vlaneseq
    %v184 = vshrl.u32 %v183, 7
    %v185 = vsub.s32 2, %v184
    %v186 = vrot.slane %v176, %v185
    %v187 = vmul.f32 %v159, %v182
    %v188 = vmul.f32 %v159, %v186
    %v189 = vmul.f32 %v163, %v182
    %v190 = vmul.f32 %v163, %v186
    %v191 = vmul.f32 %v167, %v182
    %v192 = vmul.f32 %v167, %v186
    %v193 = vadd.f32 %v151, %v187
    %v194 = vadd.f32 %v152, %v188
    %v195 = vadd.f32 %v153, %v189
    %v196 = vadd.f32 %v154, %v190
    %v197 = vadd.f32 %v155, %v191
    %v198 = vadd.f32 %v156, %v192
    %199 = vset.pattern.permute.xlu0 3
    %200 = vperm.xlu0 %199, %v71
    %v201 = vpop.permute.xlu0 %200
    %203 = vset.pattern.permute.xlu0 3
    %204 = vperm.xlu0 %203, %v72
    %v205 = vpop.permute.xlu0 %204
    %207 = vset.pattern.permute.xlu0 3
    %208 = vperm.xlu0 %207, %v73
    %v209 = vpop.permute.xlu0 %208
    %v211 = vlaneseq
    %v212 = vshrl.u32 %v211, 7
    %v213 = vsub.s32 3, %v212
    %v214 = vrot.slane %v74, %v213
    %v215 = vlaneseq
    %v216 = vshrl.u32 %v215, 7
    %v217 = vsub.s32 7, %v216
    %v218 = vrot.slane %v74, %v217
    %v221 = vlaneseq
    %v222 = vshrl.u32 %v221, 7
    %v223 = vsub.s32 3, %v222
    %v224 = vrot.slane %v214, %v223
    %v225 = vlaneseq
    %v226 = vshrl.u32 %v225, 7
    %v227 = vsub.s32 3, %v226
    %v228 = vrot.slane %v218, %v227
    %v229 = vmul.f32 %v201, %v224
    %v230 = vmul.f32 %v201, %v228
    %v231 = vmul.f32 %v205, %v224
    %v232 = vmul.f32 %v205, %v228
    %v233 = vmul.f32 %v209, %v224
    %v234 = vmul.f32 %v209, %v228
    %v235 = vadd.f32 %v193, %v229
    %v236 = vadd.f32 %v194, %v230
    %v237 = vadd.f32 %v195, %v231
    %v238 = vadd.f32 %v196, %v232
    %v239 = vadd.f32 %v197, %v233
    %v240 = vadd.f32 %v198, %v234
    %242 = vset.pattern.permute.xlu0 0
    %243 = vperm.xlu0 %242, %v42
    %v244 = vpop.permute.xlu0 %243
    %247 = vset.pattern.permute.xlu0 0
    %248 = vperm.xlu0 %247, %v43
    %v249 = vpop.permute.xlu0 %248
    %252 = vset.pattern.permute.xlu0 0
    %253 = vperm.xlu0 %252, %v44
    %v254 = vpop.permute.xlu0 %253
    %v256 = vadd.f32 %v235, %v244
    %v257 = vadd.f32 %v236, %v244
    %v258 = vadd.f32 %v237, %v249
    %v259 = vadd.f32 %v238, %v249
    %v260 = vadd.f32 %v239, %v254
    %v261 = vadd.f32 %v240, %v254
    %v262 = vmax.f32 %v256, 0.0
    %v263 = vmax.f32 %v257, 0.0
    %v264 = vmax.f32 %v258, 0.0
    %v265 = vmax.f32 %v259, 0.0
    %v266 = vmax.f32 %v260, 0.0
    %v267 = vmax.f32 %v261, 0.0
    %v268 = vmin.f32 %v262, 6.0
    %v269 = vmin.f32 %v263, 6.0
    %v270 = vmin.f32 %v264, 6.0
    %v271 = vmin.f32 %v265, 6.0
    %v272 = vmin.f32 %v266, 6.0
    %v273 = vmin.f32 %v267, 6.0
    %275 = vset.pattern.permute.xlu0 4
    %276 = vperm.xlu0 %275, %v45
    %v277 = vpop.permute.xlu0 %276
    %280 = vset.pattern.permute.xlu0 4
    %281 = vperm.xlu0 %280, %v46
    %v282 = vpop.permute.xlu0 %281
    %285 = vset.pattern.permute.xlu0 4
    %286 = vperm.xlu0 %285, %v47
    %v287 = vpop.permute.xlu0 %286
    %v289 = vmul.f32 %v268, %v277
    %v290 = vmul.f32 %v269, %v277
    %v291 = vmul.f32 %v270, %v282
    %v292 = vmul.f32 %v271, %v282
    %v293 = vmul.f32 %v272, %v287
    %v294 = vmul.f32 %v273, %v287
    %295 = vrot.lane.b32.xlu0 %v268, 17
    %v296 = vpop.permute.xlu0 %295
    %297 = vrot.lane.b32.xlu0 %v270, 17
    %v298 = vpop.permute.xlu0 %297
    %299 = vrot.lane.b32.xlu0 %v272, 17
    %v300 = vpop.permute.xlu0 %299
    %301 = vrot.lane.b32.xlu0 %v269, 17
    %v302 = vpop.permute.xlu0 %301
    %303 = vrot.lane.b32.xlu0 %v271, 17
    %v304 = vpop.permute.xlu0 %303
    %305 = vrot.lane.b32.xlu0 %v273, 17
    %v306 = vpop.permute.xlu0 %305
    %v307 = vlaneseq
    %v308 = vand.u32 %v307, 127
    %vm309 = vcmp.lt.s32.totalorder %v308, 17
    %v310 = vsel %vm309, %v296, %v302
    %v311 = vsel %vm309, %v298, %v304
    %v312 = vsel %vm309, %v300, %v306
    %v313 = vsel %vm309, %v302, %v296
    %v314 = vsel %vm309, %v304, %v298
    %v315 = vsel %vm309, %v306, %v300
    %316 = vset.pattern.permute.xlu0 0
    %317 = vperm.xlu0 %316, %v45
    %v318 = vpop.permute.xlu0 %317
    %320 = vset.pattern.permute.xlu0 0
    %321 = vperm.xlu0 %320, %v46
    %v322 = vpop.permute.xlu0 %321
    %324 = vset.pattern.permute.xlu0 0
    %325 = vperm.xlu0 %324, %v47
    %v326 = vpop.permute.xlu0 %325
    %v328 = vmul.f32 %v313, %v318
    %v329 = vmul.f32 %v310, %v318
    %v330 = vmul.f32 %v314, %v322
    %v331 = vmul.f32 %v311, %v322
    %v332 = vmul.f32 %v315, %v326
    %v333 = vmul.f32 %v312, %v326
    %v334 = vlaneseq
    %v335 = vshrl.u32 %v334, 7
    %v336 = vsub.s32 0, %v335
    %v337 = vrot.slane %v54, %v336
    %v338 = vlaneseq
    %v339 = vshrl.u32 %v338, 7
    %v340 = vsub.s32 0, %v339
    %v341 = vrot.slane %v55, %v340
    %v342 = vmul.f32 %v328, %v337
    %v343 = vmul.f32 %v329, %v341
    %v344 = vmul.f32 %v330, %v337
    %v345 = vmul.f32 %v331, %v341
    %v346 = vmul.f32 %v332, %v337
    %v347 = vmul.f32 %v333, %v341
    %v348 = vadd.f32 %v289, %v342
    %v349 = vadd.f32 %v290, %v343
    %v350 = vadd.f32 %v291, %v344
    %v351 = vadd.f32 %v292, %v345
    %v352 = vadd.f32 %v293, %v346
    %v353 = vadd.f32 %v294, %v347
    %354 = vrot.lane.b32.xlu0 %v268, 16
    %v355 = vpop.permute.xlu0 %354
    %356 = vrot.lane.b32.xlu0 %v270, 16
    %v357 = vpop.permute.xlu0 %356
    %358 = vrot.lane.b32.xlu0 %v272, 16
    %v359 = vpop.permute.xlu0 %358
    %360 = vrot.lane.b32.xlu0 %v269, 16
    %v361 = vpop.permute.xlu0 %360
    %362 = vrot.lane.b32.xlu0 %v271, 16
    %v363 = vpop.permute.xlu0 %362
    %364 = vrot.lane.b32.xlu0 %v273, 16
    %v365 = vpop.permute.xlu0 %364
    %vm366 = vcmp.lt.s32.totalorder %v308, 16
    %v367 = vsel %vm366, %v355, %v361
    %v368 = vsel %vm366, %v357, %v363
    %v369 = vsel %vm366, %v359, %v365
    %v370 = vsel %vm366, %v361, %v355
    %v371 = vsel %vm366, %v363, %v357
    %v372 = vsel %vm366, %v365, %v359
    %373 = vset.pattern.permute.xlu0 1
    %374 = vperm.xlu0 %373, %v45
    %v375 = vpop.permute.xlu0 %374
    %377 = vset.pattern.permute.xlu0 1
    %378 = vperm.xlu0 %377, %v46
    %v379 = vpop.permute.xlu0 %378
    %381 = vset.pattern.permute.xlu0 1
    %382 = vperm.xlu0 %381, %v47
    %v383 = vpop.permute.xlu0 %382
    %v385 = vmul.f32 %v370, %v375
    %v386 = vmul.f32 %v367, %v375
    %v387 = vmul.f32 %v371, %v379
    %v388 = vmul.f32 %v368, %v379
    %v389 = vmul.f32 %v372, %v383
    %v390 = vmul.f32 %v369, %v383
    %v391 = vlaneseq
    %v392 = vshrl.u32 %v391, 7
    %v393 = vsub.s32 1, %v392
    %v394 = vrot.slane %v54, %v393
    %v395 = vlaneseq
    %v396 = vshrl.u32 %v395, 7
    %v397 = vsub.s32 1, %v396
    %v398 = vrot.slane %v55, %v397
    %v399 = vmul.f32 %v385, %v394
    %v400 = vmul.f32 %v386, %v398
    %v401 = vmul.f32 %v387, %v394
    %v402 = vmul.f32 %v388, %v398
    %v403 = vmul.f32 %v389, %v394
    %v404 = vmul.f32 %v390, %v398
    %v405 = vadd.f32 %v348, %v399
    %v406 = vadd.f32 %v349, %v400
    %v407 = vadd.f32 %v350, %v401
    %v408 = vadd.f32 %v351, %v402
    %v409 = vadd.f32 %v352, %v403
    %v410 = vadd.f32 %v353, %v404
    %411 = vrot.lane.b32.xlu0 %v268, 15
    %v412 = vpop.permute.xlu0 %411
    %413 = vrot.lane.b32.xlu0 %v270, 15
    %v414 = vpop.permute.xlu0 %413
    %415 = vrot.lane.b32.xlu0 %v272, 15
    %v416 = vpop.permute.xlu0 %415
    %417 = vrot.lane.b32.xlu0 %v269, 15
    %v418 = vpop.permute.xlu0 %417
    %419 = vrot.lane.b32.xlu0 %v271, 15
    %v420 = vpop.permute.xlu0 %419
    %421 = vrot.lane.b32.xlu0 %v273, 15
    %v422 = vpop.permute.xlu0 %421
    %vm423 = vcmp.lt.s32.totalorder %v308, 15
    %v424 = vsel %vm423, %v412, %v418
    %v425 = vsel %vm423, %v414, %v420
    %v426 = vsel %vm423, %v416, %v422
    %v427 = vsel %vm423, %v418, %v412
    %v428 = vsel %vm423, %v420, %v414
    %v429 = vsel %vm423, %v422, %v416
    %430 = vset.pattern.permute.xlu0 2
    %431 = vperm.xlu0 %430, %v45
    %v432 = vpop.permute.xlu0 %431
    %434 = vset.pattern.permute.xlu0 2
    %435 = vperm.xlu0 %434, %v46
    %v436 = vpop.permute.xlu0 %435
    %438 = vset.pattern.permute.xlu0 2
    %439 = vperm.xlu0 %438, %v47
    %v440 = vpop.permute.xlu0 %439
    %v442 = vmul.f32 %v427, %v432
    %v443 = vmul.f32 %v424, %v432
    %v444 = vmul.f32 %v428, %v436
    %v445 = vmul.f32 %v425, %v436
    %v446 = vmul.f32 %v429, %v440
    %v447 = vmul.f32 %v426, %v440
    %v448 = vlaneseq
    %v449 = vshrl.u32 %v448, 7
    %v450 = vsub.s32 2, %v449
    %v451 = vrot.slane %v54, %v450
    %v452 = vlaneseq
    %v453 = vshrl.u32 %v452, 7
    %v454 = vsub.s32 2, %v453
    %v455 = vrot.slane %v55, %v454
    %v456 = vmul.f32 %v442, %v451
    %v457 = vmul.f32 %v443, %v455
    %v458 = vmul.f32 %v444, %v451
    %v459 = vmul.f32 %v445, %v455
    %v460 = vmul.f32 %v446, %v451
    %v461 = vmul.f32 %v447, %v455
    %v462 = vadd.f32 %v405, %v456
    %v463 = vadd.f32 %v406, %v457
    %v464 = vadd.f32 %v407, %v458
    %v465 = vadd.f32 %v408, %v459
    %v466 = vadd.f32 %v409, %v460
    %v467 = vadd.f32 %v410, %v461
    %468 = vrot.lane.b32.xlu0 %v268, 1
    %v469 = vpop.permute.xlu0 %468
    %470 = vrot.lane.b32.xlu0 %v270, 1
    %v471 = vpop.permute.xlu0 %470
    %472 = vrot.lane.b32.xlu0 %v272, 1
    %v473 = vpop.permute.xlu0 %472
    %474 = vrot.lane.b32.xlu0 %v269, 1
    %v475 = vpop.permute.xlu0 %474
    %476 = vrot.lane.b32.xlu0 %v271, 1
    %v477 = vpop.permute.xlu0 %476
    %478 = vrot.lane.b32.xlu0 %v273, 1
    %v479 = vpop.permute.xlu0 %478
    %vm480 = vcmp.lt.s32.totalorder %v308, 1
    %v481 = vsel %vm480, %v469, %v475
    %v482 = vsel %vm480, %v471, %v477
    %v483 = vsel %vm480, %v473, %v479
    %v484 = vsel %vm480, %v475, %v469
    %v485 = vsel %vm480, %v477, %v471
    %v486 = vsel %vm480, %v479, %v473
    %487 = vset.pattern.permute.xlu0 3
    %488 = vperm.xlu0 %487, %v45
    %v489 = vpop.permute.xlu0 %488
    %491 = vset.pattern.permute.xlu0 3
    %492 = vperm.xlu0 %491, %v46
    %v493 = vpop.permute.xlu0 %492
    %495 = vset.pattern.permute.xlu0 3
    %496 = vperm.xlu0 %495, %v47
    %v497 = vpop.permute.xlu0 %496
    %v499 = vmul.f32 %v484, %v489
    %v500 = vmul.f32 %v481, %v489
    %v501 = vmul.f32 %v485, %v493
    %v502 = vmul.f32 %v482, %v493
    %v503 = vmul.f32 %v486, %v497
    %v504 = vmul.f32 %v483, %v497
    %v505 = vlaneseq
    %v506 = vshrl.u32 %v505, 7
    %v507 = vsub.s32 3, %v506
    %v508 = vrot.slane %v54, %v507
    %v509 = vlaneseq
    %v510 = vshrl.u32 %v509, 7
    %v511 = vsub.s32 3, %v510
    %v512 = vrot.slane %v55, %v511
    %v513 = vmul.f32 %v499, %v508
    %v514 = vmul.f32 %v500, %v512
    %v515 = vmul.f32 %v501, %v508
    %v516 = vmul.f32 %v502, %v512
    %v517 = vmul.f32 %v503, %v508
    %v518 = vmul.f32 %v504, %v512
    %v519 = vadd.f32 %v462, %v513
    %v520 = vadd.f32 %v463, %v514
    %v521 = vadd.f32 %v464, %v515
    %v522 = vadd.f32 %v465, %v516
    %v523 = vadd.f32 %v466, %v517
    %v524 = vadd.f32 %v467, %v518
    %525 = vrot.lane.b32.xlu0 %v268, 127
    %v526 = vpop.permute.xlu0 %525
    %527 = vrot.lane.b32.xlu0 %v270, 127
    %v528 = vpop.permute.xlu0 %527
    %529 = vrot.lane.b32.xlu0 %v272, 127
    %v530 = vpop.permute.xlu0 %529
    %531 = vrot.lane.b32.xlu0 %v269, 127
    %v532 = vpop.permute.xlu0 %531
    %533 = vrot.lane.b32.xlu0 %v271, 127
    %v534 = vpop.permute.xlu0 %533
    %535 = vrot.lane.b32.xlu0 %v273, 127
    %v536 = vpop.permute.xlu0 %535
    %vm537 = vcmp.lt.s32.totalorder %v308, 127
    %v538 = vsel %vm537, %v526, %v532
    %v539 = vsel %vm537, %v528, %v534
    %v540 = vsel %vm537, %v530, %v536
    %v541 = vsel %vm537, %v532, %v526
    %v542 = vsel %vm537, %v534, %v528
    %v543 = vsel %vm537, %v536, %v530
    %544 = vset.pattern.permute.xlu0 5
    %545 = vperm.xlu0 %544, %v45
    %v546 = vpop.permute.xlu0 %545
    %548 = vset.pattern.permute.xlu0 5
    %549 = vperm.xlu0 %548, %v46
    %v550 = vpop.permute.xlu0 %549
    %552 = vset.pattern.permute.xlu0 5
    %553 = vperm.xlu0 %552, %v47
    %v554 = vpop.permute.xlu0 %553
    %v556 = vmul.f32 %v538, %v546
    %v557 = vmul.f32 %v541, %v546
    %v558 = vmul.f32 %v539, %v550
    %v559 = vmul.f32 %v542, %v550
    %v560 = vmul.f32 %v540, %v554
    %v561 = vmul.f32 %v543, %v554
    %v562 = vlaneseq
    %v563 = vshrl.u32 %v562, 7
    %v564 = vsub.s32 4, %v563
    %v565 = vrot.slane %v54, %v564
    %v566 = vlaneseq
    %v567 = vshrl.u32 %v566, 7
    %v568 = vsub.s32 4, %v567
    %v569 = vrot.slane %v55, %v568
    %v570 = vmul.f32 %v556, %v565
    %v571 = vmul.f32 %v557, %v569
    %v572 = vmul.f32 %v558, %v565
    %v573 = vmul.f32 %v559, %v569
    %v574 = vmul.f32 %v560, %v565
    %v575 = vmul.f32 %v561, %v569
    %v576 = vadd.f32 %v519, %v570
    %v577 = vadd.f32 %v520, %v571
    %v578 = vadd.f32 %v521, %v572
    %v579 = vadd.f32 %v522, %v573
    %v580 = vadd.f32 %v523, %v574
    %v581 = vadd.f32 %v524, %v575
    %582 = vrot.lane.b32.xlu0 %v268, 113
    %v583 = vpop.permute.xlu0 %582
    %584 = vrot.lane.b32.xlu0 %v270, 113
    %v585 = vpop.permute.xlu0 %584
    %586 = vrot.lane.b32.xlu0 %v272, 113
    %v587 = vpop.permute.xlu0 %586
    %588 = vrot.lane.b32.xlu0 %v269, 113
    %v589 = vpop.permute.xlu0 %588
    %590 = vrot.lane.b32.xlu0 %v271, 113
    %v591 = vpop.permute.xlu0 %590
    %592 = vrot.lane.b32.xlu0 %v273, 113
    %v593 = vpop.permute.xlu0 %592
    %vm594 = vcmp.lt.s32.totalorder %v308, 113
    %v595 = vsel %vm594, %v583, %v589
    %v596 = vsel %vm594, %v585, %v591
    %v597 = vsel %vm594, %v587, %v593
    %v598 = vsel %vm594, %v589, %v583
    %v599 = vsel %vm594, %v591, %v585
    %v600 = vsel %vm594, %v593, %v587
    %601 = vset.pattern.permute.xlu0 6
    %602 = vperm.xlu0 %601, %v45
    %v603 = vpop.permute.xlu0 %602
    %605 = vset.pattern.permute.xlu0 6
    %606 = vperm.xlu0 %605, %v46
    %v607 = vpop.permute.xlu0 %606
    %609 = vset.pattern.permute.xlu0 6
    %610 = vperm.xlu0 %609, %v47
    %v611 = vpop.permute.xlu0 %610
    %v613 = vmul.f32 %v595, %v603
    %v614 = vmul.f32 %v598, %v603
    %v615 = vmul.f32 %v596, %v607
    %v616 = vmul.f32 %v599, %v607
    %v617 = vmul.f32 %v597, %v611
    %v618 = vmul.f32 %v600, %v611
    %v619 = vlaneseq
    %v620 = vshrl.u32 %v619, 7
    %v621 = vsub.s32 5, %v620
    %v622 = vrot.slane %v54, %v621
    %v623 = vlaneseq
    %v624 = vshrl.u32 %v623, 7
    %v625 = vsub.s32 5, %v624
    %v626 = vrot.slane %v55, %v625
    %v627 = vmul.f32 %v613, %v622
    %v628 = vmul.f32 %v614, %v626
    %v629 = vmul.f32 %v615, %v622
    %v630 = vmul.f32 %v616, %v626
    %v631 = vmul.f32 %v617, %v622
    %v632 = vmul.f32 %v618, %v626
    %v633 = vadd.f32 %v576, %v627
    %v634 = vadd.f32 %v577, %v628
    %v635 = vadd.f32 %v578, %v629
    %v636 = vadd.f32 %v579, %v630
    %v637 = vadd.f32 %v580, %v631
    %v638 = vadd.f32 %v581, %v632
    %639 = vrot.lane.b32.xlu0 %v268, 112
    %v640 = vpop.permute.xlu0 %639
    %641 = vrot.lane.b32.xlu0 %v270, 112
    %v642 = vpop.permute.xlu0 %641
    %643 = vrot.lane.b32.xlu0 %v272, 112
    %v644 = vpop.permute.xlu0 %643
    %645 = vrot.lane.b32.xlu0 %v269, 112
    %v646 = vpop.permute.xlu0 %645
    %647 = vrot.lane.b32.xlu0 %v271, 112
    %v648 = vpop.permute.xlu0 %647
    %649 = vrot.lane.b32.xlu0 %v273, 112
    %v650 = vpop.permute.xlu0 %649
    %vm651 = vcmp.lt.s32.totalorder %v308, 112
    %v652 = vsel %vm651, %v640, %v646
    %v653 = vsel %vm651, %v642, %v648
    %v654 = vsel %vm651, %v644, %v650
    %v655 = vsel %vm651, %v646, %v640
    %v656 = vsel %vm651, %v648, %v642
    %v657 = vsel %vm651, %v650, %v644
    %658 = vset.pattern.permute.xlu0 7
    %659 = vperm.xlu0 %658, %v45
    %v660 = vpop.permute.xlu0 %659
    %662 = vset.pattern.permute.xlu0 7
    %663 = vperm.xlu0 %662, %v46
    %v664 = vpop.permute.xlu0 %663
    %666 = vset.pattern.permute.xlu0 7
    %667 = vperm.xlu0 %666, %v47
    %v668 = vpop.permute.xlu0 %667
    %v670 = vmul.f32 %v652, %v660
    %v671 = vmul.f32 %v655, %v660
    %v672 = vmul.f32 %v653, %v664
    %v673 = vmul.f32 %v656, %v664
    %v674 = vmul.f32 %v654, %v668
    %v675 = vmul.f32 %v657, %v668
    %v676 = vlaneseq
    %v677 = vshrl.u32 %v676, 7
    %v678 = vsub.s32 6, %v677
    %v679 = vrot.slane %v54, %v678
    %v680 = vlaneseq
    %v681 = vshrl.u32 %v680, 7
    %v682 = vsub.s32 6, %v681
    %v683 = vrot.slane %v55, %v682
    %v684 = vmul.f32 %v670, %v679
    %v685 = vmul.f32 %v671, %v683
    %v686 = vmul.f32 %v672, %v679
    %v687 = vmul.f32 %v673, %v683
    %v688 = vmul.f32 %v674, %v679
    %v689 = vmul.f32 %v675, %v683
    %v690 = vadd.f32 %v633, %v684
    %v691 = vadd.f32 %v634, %v685
    %v692 = vadd.f32 %v635, %v686
    %v693 = vadd.f32 %v636, %v687
    %v694 = vadd.f32 %v637, %v688
    %v695 = vadd.f32 %v638, %v689
    %696 = vrot.lane.b32.xlu0 %v268, 111
    %v697 = vpop.permute.xlu0 %696
    %698 = vrot.lane.b32.xlu0 %v270, 111
    %v699 = vpop.permute.xlu0 %698
    %700 = vrot.lane.b32.xlu0 %v272, 111
    %v701 = vpop.permute.xlu0 %700
    %702 = vrot.lane.b32.xlu0 %v269, 111
    %v703 = vpop.permute.xlu0 %702
    %704 = vrot.lane.b32.xlu0 %v271, 111
    %v705 = vpop.permute.xlu0 %704
    %706 = vrot.lane.b32.xlu0 %v273, 111
    %v707 = vpop.permute.xlu0 %706
    %vm708 = vcmp.lt.s32.totalorder %v308, 111
    %v709 = vsel %vm708, %v697, %v703
    %v710 = vsel %vm708, %v699, %v705
    %v711 = vsel %vm708, %v701, %v707
    %v712 = vsel %vm708, %v703, %v697
    %v713 = vsel %vm708, %v705, %v699
    %v714 = vsel %vm708, %v707, %v701
    %715 = vset.pattern.permute.xlu0 8
    %716 = vperm.xlu0 %715, %v45
    %v717 = vpop.permute.xlu0 %716
    %719 = vset.pattern.permute.xlu0 8
    %720 = vperm.xlu0 %719, %v46
    %v721 = vpop.permute.xlu0 %720
    %723 = vset.pattern.permute.xlu0 8
    %724 = vperm.xlu0 %723, %v47
    %v725 = vpop.permute.xlu0 %724
    %v727 = vmul.f32 %v709, %v717
    %v728 = vmul.f32 %v712, %v717
    %v729 = vmul.f32 %v710, %v721
    %v730 = vmul.f32 %v713, %v721
    %v731 = vmul.f32 %v711, %v725
    %v732 = vmul.f32 %v714, %v725
    %v733 = vlaneseq
    %v734 = vshrl.u32 %v733, 7
    %v735 = vsub.s32 7, %v734
    %v736 = vrot.slane %v54, %v735
    %v737 = vlaneseq
    %v738 = vshrl.u32 %v737, 7
    %v739 = vsub.s32 7, %v738
    %v740 = vrot.slane %v55, %v739
    %v741 = vmul.f32 %v727, %v736
    %v742 = vmul.f32 %v728, %v740
    %v743 = vmul.f32 %v729, %v736
    %v744 = vmul.f32 %v730, %v740
    %v745 = vmul.f32 %v731, %v736
    %v746 = vmul.f32 %v732, %v740
    %v747 = vadd.f32 %v690, %v741
    %v748 = vadd.f32 %v691, %v742
    %v749 = vadd.f32 %v692, %v743
    %v750 = vadd.f32 %v693, %v744
    %v751 = vadd.f32 %v694, %v745
    %v752 = vadd.f32 %v695, %v746
    %754 = vset.pattern.permute.xlu0 0
    %755 = vperm.xlu0 %754, %v48
    %v756 = vpop.permute.xlu0 %755
    %759 = vset.pattern.permute.xlu0 0
    %760 = vperm.xlu0 %759, %v49
    %v761 = vpop.permute.xlu0 %760
    %764 = vset.pattern.permute.xlu0 0
    %765 = vperm.xlu0 %764, %v50
    %v766 = vpop.permute.xlu0 %765
    %v768 = vadd.f32 %v747, %v756
    %v769 = vadd.f32 %v748, %v756
    %v770 = vadd.f32 %v749, %v761
    %v771 = vadd.f32 %v750, %v761
    %v772 = vadd.f32 %v751, %v766
    %v773 = vadd.f32 %v752, %v766
    %v774 = vmax.f32 %v768, 0.0
    %v775 = vmax.f32 %v769, 0.0
    %v776 = vmax.f32 %v770, 0.0
    %v777 = vmax.f32 %v771, 0.0
    %v778 = vmax.f32 %v772, 0.0
    %v779 = vmax.f32 %v773, 0.0
    %v780 = vmin.f32 %v774, 6.0
    %v781 = vmin.f32 %v775, 6.0
    %v782 = vmin.f32 %v776, 6.0
    %v783 = vmin.f32 %v777, 6.0
    %v784 = vmin.f32 %v778, 6.0
    %v785 = vmin.f32 %v779, 6.0
    %vm786 = vcmask 195584
    %v788 = vsel %vm786, %v51, 0
    %790 = vmatprep.subr.mxu0 %v781
    %791 = vmatpush1.msra.mxu0 %v780
    %792 = vmatprep.subr.mxu0 %v783
    %793 = vmatpush1.msra.mxu0 %v782
    %794 = vmatprep.subr.mxu0 %v785
    %795 = vmatpush1.msra.mxu0 %v784
    %796 = vmatprep.subr.mxu0 0.0
    %797 = vmatpush1.msra.mxu0 0.0
    %798 = vmatprep.subr.mxu0 0.0
    %799 = vmatpush1.msra.mxu0 0.0
    %800 = vmatprep.subr.mxu0 0.0
    %801 = vmatpush1.msra.mxu0 0.0
    %802 = vmatprep.subr.mxu0 0.0
    %803 = vmatpush1.msra.mxu0 0.0
    %804 = vmatprep.subr.mxu0 0.0
    %805 = vmatpush1.msra.mxu0 0.0
    %806 = vmatprep.subr.mxu0 0.0
    %807 = vmatpush1.msra.mxu0 0.0
    %808 = vmatprep.subr.mxu0 0.0
    %809 = vmatpush1.msra.mxu0 0.0
    %810 = vmatprep.subr.mxu0 0.0
    %811 = vmatpush1.msra.mxu0 0.0
    %812 = vmatprep.subr.mxu0 0.0
    %813 = vmatpush1.msra.mxu0 0.0
    %814 = vmatprep.subr.mxu0 0.0
    %815 = vmatpush1.msra.mxu0 0.0
    %816 = vmatprep.subr.mxu0 0.0
    %817 = vmatpush1.msra.mxu0 0.0
    %818 = vmatprep.subr.mxu0 0.0
    %819 = vmatpush1.msra.mxu0 0.0
    %820 = vmatprep.subr.mxu0 0.0
    %821 = vmatpush1.msra.mxu0 0.0
    %822 = vmatprep.subr.mxu0 0.0
    %823 = vmatpush1.msra.mxu0 0.0
    %824 = vmatprep.subr.mxu0 0.0
    %825 = vmatpush1.msra.mxu0 0.0
    %826 = vmatprep.subr.mxu0 0.0
    %827 = vmatpush1.msra.mxu0 0.0
    %828 = vmatprep.subr.mxu0 0.0
    %829 = vmatpush1.msra.mxu0 0.0
    %830 = vmatprep.subr.mxu0 0.0
    %831 = vmatpush1.msra.mxu0 0.0
    %832 = vmatprep.subr.mxu0 0.0
    %833 = vmatpush1.msra.mxu0 0.0
    %834 = vmatprep.subr.mxu0 0.0
    %835 = vmatpush1.msra.mxu0 0.0
    %836 = vmatprep.subr.mxu0 0.0
    %837 = vmatpush1.msra.mxu0 0.0
    %838 = vmatprep.subr.mxu0 0.0
    %839 = vmatpush1.msra.mxu0 0.0
    %840 = vmatprep.subr.mxu0 0.0
    %841 = vmatpush1.msra.mxu0 0.0
    %842 = vmatprep.subr.mxu0 0.0
    %843 = vmatpush1.msra.mxu0 0.0
    %844 = vmatprep.subr.mxu0 0.0
    %845 = vmatpush1.msra.mxu0 0.0
    %846 = vmatprep.subr.mxu0 0.0
    %847 = vmatpush1.msra.mxu0 0.0
    %848 = vmatprep.subr.mxu0 0.0
    %849 = vmatpush1.msra.mxu0 0.0
    %850 = vmatprep.subr.mxu0 0.0
    %851 = vmatpush1.msra.mxu0 0.0
    %852 = vmatprep.subr.mxu0 0.0
    %853 = vmatpush1.msra.mxu0 0.0
    %854 = vmatprep.mubr.f32.mxu0 0.0
    %855 = vmatmul.mubr.f32.gmra.mrb[0].mxu0 %v788
    %v856 = vpop.f32.mrb[0].mxu0
    %v857 = vadd.f32 0.0, %v856
    %v858 = vpop.f32.mrb[0].mxu0
    %v859 = vadd.f32 0.0, %v858
    %860 = vdwg.mxu0
    %862 = vset.pattern.permute.xlu0 0
    %863 = vperm.xlu0 %862, %v52
    %v864 = vpop.permute.xlu0 %863
    %v866 = vmul.f32 %v857, %v864
    %v867 = vmul.f32 %v859, %v864
    %869 = vset.pattern.permute.xlu0 0
    %870 = vperm.xlu0 %869, %v53
    %v871 = vpop.permute.xlu0 %870
    %v873 = vadd.f32 %v866, %v871
    %v874 = vadd.f32 %v867, %v871
    %v875 = vcombine.high %v74, %v74
    %v877 = vadd.f32 %v873, %v74
    %v878 = vadd.f32 %v874, %v875
    %v881 = vcombine.low %v877, %v878
    %883 = vst [vmem:[#allocation2] sm:$0xff] %v881
    %s884 = scalar_lea.vmem %s0, 8
    %v885 = vld [vmem:[%s884] sm:$0xff]
    %v887 = vlaneseq
    %v888 = vshrl.u32 %v887, 7
    %v889 = vsub.s32 0, %v888
    %v890 = vrot.slane %v885, %v889
    %v891 = vlaneseq
    %v892 = vshrl.u32 %v891, 7
    %v893 = vsub.s32 4, %v892
    %v894 = vrot.slane %v885, %v893
    %v897 = vlaneseq
    %v898 = vshrl.u32 %v897, 7
    %v899 = vsub.s32 0, %v898
    %v900 = vrot.slane %v890, %v899
    %v901 = vlaneseq
    %v902 = vshrl.u32 %v901, 7
    %v903 = vsub.s32 0, %v902
    %v904 = vrot.slane %v894, %v903
    %v905 = vmul.f32 %v78, %v900
    %v906 = vmul.f32 %v78, %v904
    %v907 = vmul.f32 %v83, %v900
    %v908 = vmul.f32 %v83, %v904
    %v909 = vmul.f32 %v88, %v900
    %v910 = vmul.f32 %v88, %v904
    %v911 = vlaneseq
    %v912 = vshrl.u32 %v911, 7
    %v913 = vsub.s32 1, %v912
    %v914 = vrot.slane %v885, %v913
    %v915 = vlaneseq
    %v916 = vshrl.u32 %v915, 7
    %v917 = vsub.s32 5, %v916
    %v918 = vrot.slane %v885, %v917
    %v921 = vlaneseq
    %v922 = vshrl.u32 %v921, 7
    %v923 = vsub.s32 1, %v922
    %v924 = vrot.slane %v914, %v923
    %v925 = vlaneseq
    %v926 = vshrl.u32 %v925, 7
    %v927 = vsub.s32 1, %v926
    %v928 = vrot.slane %v918, %v927
    %v929 = vmul.f32 %v117, %v924
    %v930 = vmul.f32 %v117, %v928
    %v931 = vmul.f32 %v121, %v924
    %v932 = vmul.f32 %v121, %v928
    %v933 = vmul.f32 %v125, %v924
    %v934 = vmul.f32 %v125, %v928
    %v935 = vadd.f32 %v905, %v929
    %v936 = vadd.f32 %v906, %v930
    %v937 = vadd.f32 %v907, %v931
    %v938 = vadd.f32 %v908, %v932
    %v939 = vadd.f32 %v909, %v933
    %v940 = vadd.f32 %v910, %v934
    %v941 = vlaneseq
    %v942 = vshrl.u32 %v941, 7
    %v943 = vsub.s32 2, %v942
    %v944 = vrot.slane %v885, %v943
    %v945 = vlaneseq
    %v946 = vshrl.u32 %v945, 7
    %v947 = vsub.s32 6, %v946
    %v948 = vrot.slane %v885, %v947
    %v951 = vlaneseq
    %v952 = vshrl.u32 %v951, 7
    %v953 = vsub.s32 2, %v952
    %v954 = vrot.slane %v944, %v953
    %v955 = vlaneseq
    %v956 = vshrl.u32 %v955, 7
    %v957 = vsub.s32 2, %v956
    %v958 = vrot.slane %v948, %v957
    %v959 = vmul.f32 %v159, %v954
    %v960 = vmul.f32 %v159, %v958
    %v961 = vmul.f32 %v163, %v954
    %v962 = vmul.f32 %v163, %v958
    %v963 = vmul.f32 %v167, %v954
    %v964 = vmul.f32 %v167, %v958
    %v965 = vadd.f32 %v935, %v959
    %v966 = vadd.f32 %v936, %v960
    %v967 = vadd.f32 %v937, %v961
    %v968 = vadd.f32 %v938, %v962
    %v969 = vadd.f32 %v939, %v963
    %v970 = vadd.f32 %v940, %v964
    %v971 = vlaneseq
    %v972 = vshrl.u32 %v971, 7
    %v973 = vsub.s32 3, %v972
    %v974 = vrot.slane %v885, %v973
    %v975 = vlaneseq
    %v976 = vshrl.u32 %v975, 7
    %v977 = vsub.s32 7, %v976
    %v978 = vrot.slane %v885, %v977
    %v981 = vlaneseq
    %v982 = vshrl.u32 %v981, 7
    %v983 = vsub.s32 3, %v982
    %v984 = vrot.slane %v974, %v983
    %v985 = vlaneseq
    %v986 = vshrl.u32 %v985, 7
    %v987 = vsub.s32 3, %v986
    %v988 = vrot.slane %v978, %v987
    %v989 = vmul.f32 %v201, %v984
    %v990 = vmul.f32 %v201, %v988
    %v991 = vmul.f32 %v205, %v984
    %v992 = vmul.f32 %v205, %v988
    %v993 = vmul.f32 %v209, %v984
    %v994 = vmul.f32 %v209, %v988
    %v995 = vadd.f32 %v965, %v989
    %v996 = vadd.f32 %v966, %v990
    %v997 = vadd.f32 %v967, %v991
    %v998 = vadd.f32 %v968, %v992
    %v999 = vadd.f32 %v969, %v993
    %v1000 = vadd.f32 %v970, %v994
    %v1001 = vadd.f32 %v995, %v244
    %v1002 = vadd.f32 %v996, %v244
    %v1003 = vadd.f32 %v997, %v249
    %v1004 = vadd.f32 %v998, %v249
    %v1005 = vadd.f32 %v999, %v254
    %v1006 = vadd.f32 %v1000, %v254
    %v1007 = vmax.f32 %v1001, 0.0
    %v1008 = vmax.f32 %v1002, 0.0
    %v1009 = vmax.f32 %v1003, 0.0
    %v1010 = vmax.f32 %v1004, 0.0
    %v1011 = vmax.f32 %v1005, 0.0
    %v1012 = vmax.f32 %v1006, 0.0
    %v1013 = vmin.f32 %v1007, 6.0
    %v1014 = vmin.f32 %v1008, 6.0
    %v1015 = vmin.f32 %v1009, 6.0
    %v1016 = vmin.f32 %v1010, 6.0
    %v1017 = vmin.f32 %v1011, 6.0
    %v1018 = vmin.f32 %v1012, 6.0
    %v1019 = vmul.f32 %v1013, %v277
    %v1020 = vmul.f32 %v1014, %v277
    %v1021 = vmul.f32 %v1015, %v282
    %v1022 = vmul.f32 %v1016, %v282
    %v1023 = vmul.f32 %v1017, %v287
    %v1024 = vmul.f32 %v1018, %v287
    %1025 = vrot.lane.b32.xlu0 %v1013, 17
    %v1026 = vpop.permute.xlu0 %1025
    %1027 = vrot.lane.b32.xlu0 %v1015, 17
    %v1028 = vpop.permute.xlu0 %1027
    %1029 = vrot.lane.b32.xlu0 %v1017, 17
    %v1030 = vpop.permute.xlu0 %1029
    %1031 = vrot.lane.b32.xlu0 %v1014, 17
    %v1032 = vpop.permute.xlu0 %1031
    %1033 = vrot.lane.b32.xlu0 %v1016, 17
    %v1034 = vpop.permute.xlu0 %1033
    %1035 = vrot.lane.b32.xlu0 %v1018, 17
    %v1036 = vpop.permute.xlu0 %1035
    %v1037 = vsel %vm309, %v1026, %v1032
    %v1038 = vsel %vm309, %v1028, %v1034
    %v1039 = vsel %vm309, %v1030, %v1036
    %v1040 = vsel %vm309, %v1032, %v1026
    %v1041 = vsel %vm309, %v1034, %v1028
    %v1042 = vsel %vm309, %v1036, %v1030
    %v1043 = vmul.f32 %v1040, %v318
    %v1044 = vmul.f32 %v1037, %v318
    %v1045 = vmul.f32 %v1041, %v322
    %v1046 = vmul.f32 %v1038, %v322
    %v1047 = vmul.f32 %v1042, %v326
    %v1048 = vmul.f32 %v1039, %v326
    %v1049 = vmul.f32 %v1043, %v337
    %v1050 = vmul.f32 %v1044, %v341
    %v1051 = vmul.f32 %v1045, %v337
    %v1052 = vmul.f32 %v1046, %v341
    %v1053 = vmul.f32 %v1047, %v337
    %v1054 = vmul.f32 %v1048, %v341
    %v1055 = vadd.f32 %v1019, %v1049
    %v1056 = vadd.f32 %v1020, %v1050
    %v1057 = vadd.f32 %v1021, %v1051
    %v1058 = vadd.f32 %v1022, %v1052
    %v1059 = vadd.f32 %v1023, %v1053
    %v1060 = vadd.f32 %v1024, %v1054
    %1061 = vrot.lane.b32.xlu0 %v1013, 16
    %v1062 = vpop.permute.xlu0 %1061
    %1063 = vrot.lane.b32.xlu0 %v1015, 16
    %v1064 = vpop.permute.xlu0 %1063
    %1065 = vrot.lane.b32.xlu0 %v1017, 16
    %v1066 = vpop.permute.xlu0 %1065
    %1067 = vrot.lane.b32.xlu0 %v1014, 16
    %v1068 = vpop.permute.xlu0 %1067
    %1069 = vrot.lane.b32.xlu0 %v1016, 16
    %v1070 = vpop.permute.xlu0 %1069
    %1071 = vrot.lane.b32.xlu0 %v1018, 16
    %v1072 = vpop.permute.xlu0 %1071
    %v1073 = vsel %vm366, %v1062, %v1068
    %v1074 = vsel %vm366, %v1064, %v1070
    %v1075 = vsel %vm366, %v1066, %v1072
    %v1076 = vsel %vm366, %v1068, %v1062
    %v1077 = vsel %vm366, %v1070, %v1064
    %v1078 = vsel %vm366, %v1072, %v1066
    %v1079 = vmul.f32 %v1076, %v375
    %v1080 = vmul.f32 %v1073, %v375
    %v1081 = vmul.f32 %v1077, %v379
    %v1082 = vmul.f32 %v1074, %v379
    %v1083 = vmul.f32 %v1078, %v383
    %v1084 = vmul.f32 %v1075, %v383
    %v1085 = vmul.f32 %v1079, %v394
    %v1086 = vmul.f32 %v1080, %v398
    %v1087 = vmul.f32 %v1081, %v394
    %v1088 = vmul.f32 %v1082, %v398
    %v1089 = vmul.f32 %v1083, %v394
    %v1090 = vmul.f32 %v1084, %v398
    %v1091 = vadd.f32 %v1055, %v1085
    %v1092 = vadd.f32 %v1056, %v1086
    %v1093 = vadd.f32 %v1057, %v1087
    %v1094 = vadd.f32 %v1058, %v1088
    %v1095 = vadd.f32 %v1059, %v1089
    %v1096 = vadd.f32 %v1060, %v1090
    %1097 = vrot.lane.b32.xlu0 %v1013, 15
    %v1098 = vpop.permute.xlu0 %1097
    %1099 = vrot.lane.b32.xlu0 %v1015, 15
    %v1100 = vpop.permute.xlu0 %1099
    %1101 = vrot.lane.b32.xlu0 %v1017, 15
    %v1102 = vpop.permute.xlu0 %1101
    %1103 = vrot.lane.b32.xlu0 %v1014, 15
    %v1104 = vpop.permute.xlu0 %1103
    %1105 = vrot.lane.b32.xlu0 %v1016, 15
    %v1106 = vpop.permute.xlu0 %1105
    %1107 = vrot.lane.b32.xlu0 %v1018, 15
    %v1108 = vpop.permute.xlu0 %1107
    %v1109 = vsel %vm423, %v1098, %v1104
    %v1110 = vsel %vm423, %v1100, %v1106
    %v1111 = vsel %vm423, %v1102, %v1108
    %v1112 = vsel %vm423, %v1104, %v1098
    %v1113 = vsel %vm423, %v1106, %v1100
    %v1114 = vsel %vm423, %v1108, %v1102
    %v1115 = vmul.f32 %v1112, %v432
    %v1116 = vmul.f32 %v1109, %v432
    %v1117 = vmul.f32 %v1113, %v436
    %v1118 = vmul.f32 %v1110, %v436
    %v1119 = vmul.f32 %v1114, %v440
    %v1120 = vmul.f32 %v1111, %v440
    %v1121 = vmul.f32 %v1115, %v451
    %v1122 = vmul.f32 %v1116, %v455
    %v1123 = vmul.f32 %v1117, %v451
    %v1124 = vmul.f32 %v1118, %v455
    %v1125 = vmul.f32 %v1119, %v451
    %v1126 = vmul.f32 %v1120, %v455
    %v1127 = vadd.f32 %v1091, %v1121
    %v1128 = vadd.f32 %v1092, %v1122
    %v1129 = vadd.f32 %v1093, %v1123
    %v1130 = vadd.f32 %v1094, %v1124
    %v1131 = vadd.f32 %v1095, %v1125
    %v1132 = vadd.f32 %v1096, %v1126
    %1133 = vrot.lane.b32.xlu0 %v1013, 1
    %v1134 = vpop.permute.xlu0 %1133
    %1135 = vrot.lane.b32.xlu0 %v1015, 1
    %v1136 = vpop.permute.xlu0 %1135
    %1137 = vrot.lane.b32.xlu0 %v1017, 1
    %v1138 = vpop.permute.xlu0 %1137
    %1139 = vrot.lane.b32.xlu0 %v1014, 1
    %v1140 = vpop.permute.xlu0 %1139
    %1141 = vrot.lane.b32.xlu0 %v1016, 1
    %v1142 = vpop.permute.xlu0 %1141
    %1143 = vrot.lane.b32.xlu0 %v1018, 1
    %v1144 = vpop.permute.xlu0 %1143
    %v1145 = vsel %vm480, %v1134, %v1140
    %v1146 = vsel %vm480, %v1136, %v1142
    %v1147 = vsel %vm480, %v1138, %v1144
    %v1148 = vsel %vm480, %v1140, %v1134
    %v1149 = vsel %vm480, %v1142, %v1136
    %v1150 = vsel %vm480, %v1144, %v1138
    %v1151 = vmul.f32 %v1148, %v489
    %v1152 = vmul.f32 %v1145, %v489
    %v1153 = vmul.f32 %v1149, %v493
    %v1154 = vmul.f32 %v1146, %v493
    %v1155 = vmul.f32 %v1150, %v497
    %v1156 = vmul.f32 %v1147, %v497
    %v1157 = vmul.f32 %v1151, %v508
    %v1158 = vmul.f32 %v1152, %v512
    %v1159 = vmul.f32 %v1153, %v508
    %v1160 = vmul.f32 %v1154, %v512
    %v1161 = vmul.f32 %v1155, %v508
    %v1162 = vmul.f32 %v1156, %v512
    %v1163 = vadd.f32 %v1127, %v1157
    %v1164 = vadd.f32 %v1128, %v1158
    %v1165 = vadd.f32 %v1129, %v1159
    %v1166 = vadd.f32 %v1130, %v1160
    %v1167 = vadd.f32 %v1131, %v1161
    %v1168 = vadd.f32 %v1132, %v1162
    %1169 = vrot.lane.b32.xlu0 %v1013, 127
    %v1170 = vpop.permute.xlu0 %1169
    %1171 = vrot.lane.b32.xlu0 %v1015, 127
    %v1172 = vpop.permute.xlu0 %1171
    %1173 = vrot.lane.b32.xlu0 %v1017, 127
    %v1174 = vpop.permute.xlu0 %1173
    %1175 = vrot.lane.b32.xlu0 %v1014, 127
    %v1176 = vpop.permute.xlu0 %1175
    %1177 = vrot.lane.b32.xlu0 %v1016, 127
    %v1178 = vpop.permute.xlu0 %1177
    %1179 = vrot.lane.b32.xlu0 %v1018, 127
    %v1180 = vpop.permute.xlu0 %1179
    %v1181 = vsel %vm537, %v1170, %v1176
    %v1182 = vsel %vm537, %v1172, %v1178
    %v1183 = vsel %vm537, %v1174, %v1180
    %v1184 = vsel %vm537, %v1176, %v1170
    %v1185 = vsel %vm537, %v1178, %v1172
    %v1186 = vsel %vm537, %v1180, %v1174
    %v1187 = vmul.f32 %v1181, %v546
    %v1188 = vmul.f32 %v1184, %v546
    %v1189 = vmul.f32 %v1182, %v550
    %v1190 = vmul.f32 %v1185, %v550
    %v1191 = vmul.f32 %v1183, %v554
    %v1192 = vmul.f32 %v1186, %v554
    %v1193 = vmul.f32 %v1187, %v565
    %v1194 = vmul.f32 %v1188, %v569
    %v1195 = vmul.f32 %v1189, %v565
    %v1196 = vmul.f32 %v1190, %v569
    %v1197 = vmul.f32 %v1191, %v565
    %v1198 = vmul.f32 %v1192, %v569
    %v1199 = vadd.f32 %v1163, %v1193
    %v1200 = vadd.f32 %v1164, %v1194
    %v1201 = vadd.f32 %v1165, %v1195
    %v1202 = vadd.f32 %v1166, %v1196
    %v1203 = vadd.f32 %v1167, %v1197
    %v1204 = vadd.f32 %v1168, %v1198
    %1205 = vrot.lane.b32.xlu0 %v1013, 113
    %v1206 = vpop.permute.xlu0 %1205
    %1207 = vrot.lane.b32.xlu0 %v1015, 113
    %v1208 = vpop.permute.xlu0 %1207
    %1209 = vrot.lane.b32.xlu0 %v1017, 113
    %v1210 = vpop.permute.xlu0 %1209
    %1211 = vrot.lane.b32.xlu0 %v1014, 113
    %v1212 = vpop.permute.xlu0 %1211
    %1213 = vrot.lane.b32.xlu0 %v1016, 113
    %v1214 = vpop.permute.xlu0 %1213
    %1215 = vrot.lane.b32.xlu0 %v1018, 113
    %v1216 = vpop.permute.xlu0 %1215
    %v1217 = vsel %vm594, %v1206, %v1212
    %v1218 = vsel %vm594, %v1208, %v1214
    %v1219 = vsel %vm594, %v1210, %v1216
    %v1220 = vsel %vm594, %v1212, %v1206
    %v1221 = vsel %vm594, %v1214, %v1208
    %v1222 = vsel %vm594, %v1216, %v1210
    %v1223 = vmul.f32 %v1217, %v603
    %v1224 = vmul.f32 %v1220, %v603
    %v1225 = vmul.f32 %v1218, %v607
    %v1226 = vmul.f32 %v1221, %v607
    %v1227 = vmul.f32 %v1219, %v611
    %v1228 = vmul.f32 %v1222, %v611
    %v1229 = vmul.f32 %v1223, %v622
    %v1230 = vmul.f32 %v1224, %v626
    %v1231 = vmul.f32 %v1225, %v622
    %v1232 = vmul.f32 %v1226, %v626
    %v1233 = vmul.f32 %v1227, %v622
    %v1234 = vmul.f32 %v1228, %v626
    %v1235 = vadd.f32 %v1199, %v1229
    %v1236 = vadd.f32 %v1200, %v1230
    %v1237 = vadd.f32 %v1201, %v1231
    %v1238 = vadd.f32 %v1202, %v1232
    %v1239 = vadd.f32 %v1203, %v1233
    %v1240 = vadd.f32 %v1204, %v1234
    %1241 = vrot.lane.b32.xlu0 %v1013, 112
    %v1242 = vpop.permute.xlu0 %1241
    %1243 = vrot.lane.b32.xlu0 %v1015, 112
    %v1244 = vpop.permute.xlu0 %1243
    %1245 = vrot.lane.b32.xlu0 %v1017, 112
    %v1246 = vpop.permute.xlu0 %1245
    %1247 = vrot.lane.b32.xlu0 %v1014, 112
    %v1248 = vpop.permute.xlu0 %1247
    %1249 = vrot.lane.b32.xlu0 %v1016, 112
    %v1250 = vpop.permute.xlu0 %1249
    %1251 = vrot.lane.b32.xlu0 %v1018, 112
    %v1252 = vpop.permute.xlu0 %1251
    %v1253 = vsel %vm651, %v1242, %v1248
    %v1254 = vsel %vm651, %v1244, %v1250
    %v1255 = vsel %vm651, %v1246, %v1252
    %v1256 = vsel %vm651, %v1248, %v1242
    %v1257 = vsel %vm651, %v1250, %v1244
    %v1258 = vsel %vm651, %v1252, %v1246
    %v1259 = vmul.f32 %v1253, %v660
    %v1260 = vmul.f32 %v1256, %v660
    %v1261 = vmul.f32 %v1254, %v664
    %v1262 = vmul.f32 %v1257, %v664
    %v1263 = vmul.f32 %v1255, %v668
    %v1264 = vmul.f32 %v1258, %v668
    %v1265 = vmul.f32 %v1259, %v679
    %v1266 = vmul.f32 %v1260, %v683
    %v1267 = vmul.f32 %v1261, %v679
    %v1268 = vmul.f32 %v1262, %v683
    %v1269 = vmul.f32 %v1263, %v679
    %v1270 = vmul.f32 %v1264, %v683
    %v1271 = vadd.f32 %v1235, %v1265
    %v1272 = vadd.f32 %v1236, %v1266
    %v1273 = vadd.f32 %v1237, %v1267
    %v1274 = vadd.f32 %v1238, %v1268
    %v1275 = vadd.f32 %v1239, %v1269
    %v1276 = vadd.f32 %v1240, %v1270
    %1277 = vrot.lane.b32.xlu0 %v1013, 111
    %v1278 = vpop.permute.xlu0 %1277
    %1279 = vrot.lane.b32.xlu0 %v1015, 111
    %v1280 = vpop.permute.xlu0 %1279
    %1281 = vrot.lane.b32.xlu0 %v1017, 111
    %v1282 = vpop.permute.xlu0 %1281
    %1283 = vrot.lane.b32.xlu0 %v1014, 111
    %v1284 = vpop.permute.xlu0 %1283
    %1285 = vrot.lane.b32.xlu0 %v1016, 111
    %v1286 = vpop.permute.xlu0 %1285
    %1287 = vrot.lane.b32.xlu0 %v1018, 111
    %v1288 = vpop.permute.xlu0 %1287
    %v1289 = vsel %vm708, %v1278, %v1284
    %v1290 = vsel %vm708, %v1280, %v1286
    %v1291 = vsel %vm708, %v1282, %v1288
    %v1292 = vsel %vm708, %v1284, %v1278
    %v1293 = vsel %vm708, %v1286, %v1280
    %v1294 = vsel %vm708, %v1288, %v1282
    %v1295 = vmul.f32 %v1289, %v717
    %v1296 = vmul.f32 %v1292, %v717
    %v1297 = vmul.f32 %v1290, %v721
    %v1298 = vmul.f32 %v1293, %v721
    %v1299 = vmul.f32 %v1291, %v725
    %v1300 = vmul.f32 %v1294, %v725
    %v1301 = vmul.f32 %v1295, %v736
    %v1302 = vmul.f32 %v1296, %v740
    %v1303 = vmul.f32 %v1297, %v736
    %v1304 = vmul.f32 %v1298, %v740
    %v1305 = vmul.f32 %v1299, %v736
    %v1306 = vmul.f32 %v1300, %v740
    %v1307 = vadd.f32 %v1271, %v1301
    %v1308 = vadd.f32 %v1272, %v1302
    %v1309 = vadd.f32 %v1273, %v1303
    %v1310 = vadd.f32 %v1274, %v1304
    %v1311 = vadd.f32 %v1275, %v1305
    %v1312 = vadd.f32 %v1276, %v1306
    %v1313 = vadd.f32 %v1307, %v756
    %v1314 = vadd.f32 %v1308, %v756
    %v1315 = vadd.f32 %v1309, %v761
    %v1316 = vadd.f32 %v1310, %v761
    %v1317 = vadd.f32 %v1311, %v766
    %v1318 = vadd.f32 %v1312, %v766
    %v1319 = vmax.f32 %v1313, 0.0
    %v1320 = vmax.f32 %v1314, 0.0
    %v1321 = vmax.f32 %v1315, 0.0
    %v1322 = vmax.f32 %v1316, 0.0
    %v1323 = vmax.f32 %v1317, 0.0
    %v1324 = vmax.f32 %v1318, 0.0
    %v1325 = vmin.f32 %v1319, 6.0
    %v1326 = vmin.f32 %v1320, 6.0
    %v1327 = vmin.f32 %v1321, 6.0
    %v1328 = vmin.f32 %v1322, 6.0
    %v1329 = vmin.f32 %v1323, 6.0
    %v1330 = vmin.f32 %v1324, 6.0
    %1331 = vmatprep.subr.mxu0 %v1326
    %1332 = vmatpush1.msra.mxu0 %v1325
    %1333 = vmatprep.subr.mxu0 %v1328
    %1334 = vmatpush1.msra.mxu0 %v1327
    %1335 = vmatprep.subr.mxu0 %v1330
    %1336 = vmatpush1.msra.mxu0 %v1329
    %1337 = vmatprep.subr.mxu0 0.0
    %1338 = vmatpush1.msra.mxu0 0.0
    %1339 = vmatprep.subr.mxu0 0.0
    %1340 = vmatpush1.msra.mxu0 0.0
    %1341 = vmatprep.subr.mxu0 0.0
    %1342 = vmatpush1.msra.mxu0 0.0
    %1343 = vmatprep.subr.mxu0 0.0
    %1344 = vmatpush1.msra.mxu0 0.0
    %1345 = vmatprep.subr.mxu0 0.0
    %1346 = vmatpush1.msra.mxu0 0.0
    %1347 = vmatprep.subr.mxu0 0.0
    %1348 = vmatpush1.msra.mxu0 0.0
    %1349 = vmatprep.subr.mxu0 0.0
    %1350 = vmatpush1.msra.mxu0 0.0
    %1351 = vmatprep.subr.mxu0 0.0
    %1352 = vmatpush1.msra.mxu0 0.0
    %1353 = vmatprep.subr.mxu0 0.0
    %1354 = vmatpush1.msra.mxu0 0.0
    %1355 = vmatprep.subr.mxu0 0.0
    %1356 = vmatpush1.msra.mxu0 0.0
    %1357 = vmatprep.subr.mxu0 0.0
    %1358 = vmatpush1.msra.mxu0 0.0
    %1359 = vmatprep.subr.mxu0 0.0
    %1360 = vmatpush1.msra.mxu0 0.0
    %1361 = vmatprep.subr.mxu0 0.0
    %1362 = vmatpush1.msra.mxu0 0.0
    %1363 = vmatprep.subr.mxu0 0.0
    %1364 = vmatpush1.msra.mxu0 0.0
    %1365 = vmatprep.subr.mxu0 0.0
    %1366 = vmatpush1.msra.mxu0 0.0
    %1367 = vmatprep.subr.mxu0 0.0
    %1368 = vmatpush1.msra.mxu0 0.0
    %1369 = vmatprep.subr.mxu0 0.0
    %1370 = vmatpush1.msra.mxu0 0.0
    %1371 = vmatprep.subr.mxu0 0.0
    %1372 = vmatpush1.msra.mxu0 0.0
    %1373 = vmatprep.subr.mxu0 0.0
    %1374 = vmatpush1.msra.mxu0 0.0
    %1375 = vmatprep.subr.mxu0 0.0
    %1376 = vmatpush1.msra.mxu0 0.0
    %1377 = vmatprep.subr.mxu0 0.0
    %1378 = vmatpush1.msra.mxu0 0.0
    %1379 = vmatprep.subr.mxu0 0.0
    %1380 = vmatpush1.msra.mxu0 0.0
    %1381 = vmatprep.subr.mxu0 0.0
    %1382 = vmatpush1.msra.mxu0 0.0
    %1383 = vmatprep.subr.mxu0 0.0
    %1384 = vmatpush1.msra.mxu0 0.0
    %1385 = vmatprep.subr.mxu0 0.0
    %1386 = vmatpush1.msra.mxu0 0.0
    %1387 = vmatprep.subr.mxu0 0.0
    %1388 = vmatpush1.msra.mxu0 0.0
    %1389 = vmatprep.subr.mxu0 0.0
    %1390 = vmatpush1.msra.mxu0 0.0
    %1391 = vmatprep.subr.mxu0 0.0
    %1392 = vmatpush1.msra.mxu0 0.0
    %1393 = vmatprep.subr.mxu0 0.0
    %1394 = vmatpush1.msra.mxu0 0.0
    %1395 = vmatprep.mubr.f32.mxu0 0.0
    %1396 = vmatmul.mubr.f32.gmra.mrb[0].mxu0 %v788
    %v1397 = vpop.f32.mrb[0].mxu0
    %v1398 = vadd.f32 0.0, %v1397
    %v1399 = vpop.f32.mrb[0].mxu0
    %v1400 = vadd.f32 0.0, %v1399
    %1401 = vdwg.mxu0
    %v1402 = vmul.f32 %v1398, %v864
    %v1403 = vmul.f32 %v1400, %v864
    %v1404 = vadd.f32 %v1402, %v871
    %v1405 = vadd.f32 %v1403, %v871
    %v1406 = vcombine.high %v885, %v885
    %v1408 = vadd.f32 %v1404, %v885
    %v1409 = vadd.f32 %v1405, %v1406
    %v1412 = vcombine.low %v1408, %v1409
    %s1414 = scalar_lea.vmem [#allocation2], 8
    %1415 = vst [vmem:[%s1414] sm:$0xff] %v1412
    // Predicated region
    $region42: #{tpu_custom_call.1} parent=1 // pred_check
      _
    $region43: #{tpu_custom_call.1} parent=1 // pred_check_branch
      %1417 = sbr.rel (0) target = $region45
    $region44: #{tpu_custom_call.1} parent=1 // pred_region
      %s1419 = ssub.s32 256, 256
      %1420 = vsyncadd [#allocation3], %s1419
      %s1421 = sshll.u32 [#allocation2], 4
      %s1422 = int_to_ptr.vmem [resolvable:$true] %s1421
      %1427 = dma.vmem_to_hbm [thread:$0]  %s1422, 256, %s10, [#allocation3], 128, 128, 8
    $region45: #{tpu_custom_call.1} parent=1 // pred_fallthru
      _
    // Predicated region
    $region46: #{tpu_custom_call.1} parent=1 // pred_check
      _
    $region47: #{tpu_custom_call.1} parent=1 // pred_check_branch
      %1429 = sbr.rel (0) target = $region49
    $region48: #{tpu_custom_call.1} parent=1 // pred_region
      %1430 = dma.done [#allocation3], 256
    $region49: #{tpu_custom_call.1} parent=1 // pred_fallthru
      _
    %1431 = vsyncpa [#allocation3], 1

</llo_original>
